<compile_context>
chip_gen: v7x
topology: tpu7x:2x2x1
jax: 0.10.0
libtpu: 0.0.40
codegen_flags: <defaults>
</compile_context>

<pallas_src>
import jax
import jax.numpy as jnp
from jax import lax
from jax.experimental import pallas as pl
from jax.experimental.pallas import tpu as pltpu


# ----------------------------------------------------------------------------
# In-kernel helpers
# ----------------------------------------------------------------------------
def _rcp(x):
    return pl.reciprocal(x, approx=True)


def _softmax(x, axis):
    m = jnp.max(x, axis=axis, keepdims=True)
    e = jnp.exp(x - m)
    return e * _rcp(jnp.sum(e, axis=axis, keepdims=True))


def _row_to_col(v):
    """(Bt, 1, N) -> (Bt, N, 1) via eye-masked reduce (avoids a transpose)."""
    n = v.shape[2]
    i = lax.broadcasted_iota(jnp.int32, (n, n), 0)
    j = lax.broadcasted_iota(jnp.int32, (n, n), 1)
    eye = (i == j).astype(v.dtype)                     # (N, N)
    return jnp.sum(eye[None] * v, axis=2, keepdims=True)


def _conv_feats(c, len_col, wc, bc, fp):
    """SentenceConv windows 1/2/3 (+ReLU, masked max-pool) for one side.

    c       : (Bt, S, D) f32 difference features (already masked)
    len_col : (Bt, 1, 1) f32 per-example valid length (prefix mask)
    wc      : (D, 6*fp) bf16 packed [w1 | w2a | w2b | w3a | w3b | w3c]
    bc      : (1, 3*fp) f32 packed [b1 | b2 | b3]
    returns (f1, f2, f3), each (Bt, fp)
    """
    # TODO(synk): SentenceConv source not provided; assumed semantics are
    # Conv1d(window=k, filters=F) over the sequence + ReLU + masked max-pool.
    bt, s, d = c.shape
    n = bt * s
    # One batched, lane-aligned matmul for all three windows (bf16 in, f32 acc).
    p = jnp.dot(c.reshape(n, d).astype(jnp.bfloat16), wc,
                preferred_element_type=jnp.float32)            # (Bt*S, 6*fp)

    pos = lax.broadcasted_iota(jnp.int32, (bt, s, 1), 1)
    len_i = len_col.astype(jnp.int32)                          # (Bt,1,1)

    def win(idx):                       # (Bt, S, fp) view of column block idx
        return p[:, idx * fp:(idx + 1) * fp].reshape(bt, s, fp)

    def shifted(idx, k):                # row t gets row t+k (wrap rows masked)
        blk = p[:, idx * fp:(idx + 1) * fp]
        return pltpu.roll(blk, shift=n - k, axis=0).reshape(bt, s, fp)

    # window = 1
    h1 = jnp.maximum(win(0) + bc[:, 0 * fp:1 * fp], 0.0)
    f1 = jnp.max(h1 * (pos < len_i).astype(jnp.float32), axis=1)        # (Bt,fp)

    # window = 2
    if s >= 2:
        h2 = jnp.maximum(win(1) + shifted(2, 1) + bc[:, 1 * fp:2 * fp], 0.0)
        f2 = jnp.max(h2 * (pos < len_i - 1).astype(jnp.float32), axis=1)
    else:
        f2 = jnp.zeros_like(f1)

    # window = 3
    if s >= 3:
        h3 = jnp.maximum(win(3) + shifted(4, 1) + shifted(5, 2)
                         + bc[:, 2 * fp:3 * fp], 0.0)
        f3 = jnp.max(h3 * (pos < len_i - 2).astype(jnp.float32), axis=1)
    else:
        f3 = jnp.zeros_like(f1)
    return f1, f2, f3


# ----------------------------------------------------------------------------
# Fused kernel: attention + difference features + SentenceConvs + dense head
# ----------------------------------------------------------------------------
def fused_kernel(flag_ref,                                      # scalar prefetch
                 lv_ref, rv_ref, lm_ref, rm_col_ref, rm_row_ref,
                 wc_ref, bc_ref, dw_ref, db_ref,
                 out_ref):
    Bt, L, D = lv_ref.shape
    R = rv_ref.shape[1]
    Fp = bc_ref.shape[1] // 3

    lv = lv_ref[...]                # (Bt, L, D) f32
    rv = rv_ref[...]                # (Bt, R, D) f32
    lm = lm_ref[...]                # (Bt, L, 1)
    rm_col = rm_col_ref[...]        # (Bt, R, 1)
    rm_row = rm_row_ref[...]        # (Bt, 1, R)

    l_len = jnp.sum(lm, axis=1, keepdims=True)                  # (Bt,1,1)
    r_len = jnp.sum(rm_col, axis=1, keepdims=True)              # (Bt,1,1)

    # ---- masked attention (bf16 MXU, f32 accumulation) ---------------------
    attn = jnp.einsum('bld,brd->blr',
                      lv.astype(jnp.bfloat16), rv.astype(jnp.bfloat16),
                      preferred_element_type=jnp.float32)       # (Bt,L,R)
    attn = attn * lm * rm_row

    # attention_r: softmax over L, re-masked / re-normalized
    ar = _softmax(attn - 10.0 * (1.0 - lm), axis=1)
    ar = ar * lm
    ar = ar * _rcp(jnp.sum(ar, axis=1, keepdims=True) + 1e-13)

    # attention_l: softmax over R, re-masked / re-normalized
    al = _softmax(attn - 10.0 * (1.0 - rm_row), axis=2)
    al = al * rm_row
    al = al * _rcp(jnp.sum(al, axis=2, keepdims=True) + 1e-13)

    # hoisted iotas, reused for argmax + one-hot on both sides
    col = lax.broadcasted_iota(jnp.int32, (Bt, L, R), 2)        # R index
    row = lax.broadcasted_iota(jnp.int32, (Bt, L, R), 1)        # L index

    # ---- left side: reduce attention_l over R ------------------------------
    inv_rlen = _rcp(r_len)
    l_mean = jnp.sum(al, axis=2, keepdims=True) * inv_rlen      # (Bt,L,1)
    l_w = jnp.sum(al * al, axis=2, keepdims=True) * inv_rlen - l_mean * l_mean
    l_w = l_w * _rcp(jnp.maximum(l_mean, 0.001))
    l_a = jnp.max(al, axis=2, keepdims=True)                    # top-1 value
    l_i = jnp.min(jnp.where(al == l_a, col, R), axis=2, keepdims=True)
    l_i = l_i * lm.astype(jnp.int32)
    l_scale = l_a * _rcp(jnp.maximum(l_a, 0.001))               # l_a / clamp(sum)
    l_onehot = (col == l_i).astype(jnp.float32) * l_scale       # (Bt,L,R)
    l_counter = jnp.einsum('blr,brd->bld', l_onehot, rv,
                           preferred_element_type=jnp.float32)  # gather via MXU
    l_c = l_w * jnp.abs(lv - l_counter) * lm                    # (Bt,L,D)

    # ---- right side: reduce attention_r over L (no big transpose) ----------
    inv_llen = _rcp(l_len)
    r_mean = jnp.sum(ar, axis=1, keepdims=True) * inv_llen      # (Bt,1,R)
    r_w = jnp.sum(ar * ar, axis=1, keepdims=True) * inv_llen - r_mean * r_mean
    r_w = r_w * _rcp(jnp.maximum(r_mean, 0.001))                # (Bt,1,R)
    r_a = jnp.max(ar, axis=1, keepdims=True)                    # (Bt,1,R)
    r_i = jnp.min(jnp.where(ar == r_a, row, L), axis=1, keepdims=True)
    r_i = r_i * rm_row.astype(jnp.int32)
    r_scale = r_a * _rcp(jnp.maximum(r_a, 0.001))
    r_onehot = (row == r_i).astype(jnp.float32) * r_scale       # (Bt,L,R)
    r_counter = jnp.einsum('blr,bld->brd', r_onehot, lv,
                           preferred_element_type=jnp.float32)  # (Bt,R,D)
    r_w_col = _row_to_col(r_w)                                  # (Bt,R,1)
    r_c = r_w_col * jnp.abs(rv - r_counter) * rm_col            # (Bt,R,D)

    # ---- SentenceConv features (shared packed weights, kept in VMEM) -------
    wc = wc_ref[...]
    bc = bc_ref[...]
    f1l, f2l, f3l = _conv_feats(l_c, l_len, wc, bc, Fp)
    f1r, f2r, f3r = _conv_feats(r_c, r_len, wc, bc, Fp)
    feats = jnp.concatenate([f1l, f2l, f3l, f1r, f2r, f3r], axis=1)  # (Bt,6*Fp)

    # empty-sequence branch: all features become zero before the dense head
    feats = jnp.where(flag_ref[0] != 0, jnp.zeros_like(feats), feats)

    # ---- dense head: Linear(6F, H) + ReLU -----------------------------------
    out = jnp.dot(feats, dw_ref[...], preferred_element_type=jnp.float32)
    out_ref[...] = jnp.maximum(out + db_ref[...], 0.0)


# ----------------------------------------------------------------------------
# Wrapper: layout, weight packing / padding, grid + BlockSpecs
# ----------------------------------------------------------------------------
def _pack_params(params, fp):
    """Pack conv weights into (D, 6*fp), biases into (1, 3*fp); repack dense."""
    f = params["conv_b1"].shape[1]
    d = params["conv_w1"].shape[0]

    def padf(w):
        return jnp.pad(w, ((0, 0), (0, fp - f)))

    w2, w3 = params["conv_w2"], params["conv_w3"]
    wc = jnp.concatenate(
        [padf(params["conv_w1"]),
         padf(w2[:d]), padf(w2[d:]),
         padf(w3[:d]), padf(w3[d:2 * d]), padf(w3[2 * d:])],
        axis=1).astype(jnp.bfloat16)                          # (D, 6*fp)
    bc = jnp.concatenate([padf(params["conv_b1"]),
                          padf(params["conv_b2"]),
                          padf(params["conv_b3"])], axis=1)   # (1, 3*fp)
    dw = params["dense_w"]                                    # (6*f, H)
    dwp = jnp.concatenate(
        [jnp.pad(dw[i * f:(i + 1) * f], ((0, fp - f), (0, 0))) for i in range(6)],
        axis=0)                                               # (6*fp, H)
    return wc, bc, dwp, params["dense_b"]


@jax.jit
def seq2seq_difference(l_lengths, l_vectors, r_lengths, r_vectors, params):
    """l_vectors: (L, B, D), r_vectors: (R, B, D) — PyTorch seq-first layout."""
    L, B, D = l_vectors.shape
    R = r_vectors.shape[0]
    H = params["dense_b"].shape[1]
    F = params["conv_b1"].shape[1]
    Fp = ((F + 127) // 128) * 128

    lv = jnp.transpose(l_vectors, (1, 0, 2)).astype(jnp.float32)   # (B, L, D)
    rv = jnp.transpose(r_vectors, (1, 0, 2)).astype(jnp.float32)   # (B, R, D)
    l_mask = (jnp.arange(L)[None, :] < l_lengths[:, None]).astype(jnp.float32)
    r_mask = (jnp.arange(R)[None, :] < r_lengths[:, None]).astype(jnp.float32)

    # Batch tiling: Bt examples per grid step (amortize per-step overhead).
    Bt = min(8, B)
    n_tiles = pl.cdiv(B, Bt)
    B_pad = n_tiles * Bt
    if B_pad != B:
        pad = B_pad - B
        lv = jnp.pad(lv, ((0, pad), (0, 0), (0, 0)))
        rv = jnp.pad(rv, ((0, pad), (0, 0), (0, 0)))
        # pad with full-length masks (vectors are zero) to avoid 0/0 in padding
        l_mask = jnp.pad(l_mask, ((0, pad), (0, 0)), constant_values=1.0)
        r_mask = jnp.pad(r_mask, ((0, pad), (0, 0)), constant_values=1.0)

    lm_col = l_mask[:, :, None]                                # (B_pad, L, 1)
    rm_col = r_mask[:, :, None]                                # (B_pad, R, 1)
    rm_row = r_mask[:, None, :]                                # (B_pad, 1, R)

    wc, bc, dwp, db = _pack_params(params, Fp)

    zero_branch = jnp.logical_or(jnp.max(l_lengths) == 0, jnp.max(r_lengths) == 0)
    flag = zero_branch.astype(jnp.int32).reshape(1)            # scalar prefetch

    grid_spec = pltpu.PrefetchScalarGridSpec(
        num_scalar_prefetch=1,
        grid=(n_tiles,),
        in_specs=[
            pl.BlockSpec((Bt, L, D), lambda b, s: (b, 0, 0)),   # l_vectors
            pl.BlockSpec((Bt, R, D), lambda b, s: (b, 0, 0)),   # r_vectors
            pl.BlockSpec((Bt, L, 1), lambda b, s: (b, 0, 0)),   # l_mask (col)
            pl.BlockSpec((Bt, R, 1), lambda b, s: (b, 0, 0)),   # r_mask (col)
            pl.BlockSpec((Bt, 1, R), lambda b, s: (b, 0, 0)),   # r_mask (row)
            pl.BlockSpec((D, 6 * Fp), lambda b, s: (0, 0)),     # packed conv W
            pl.BlockSpec((1, 3 * Fp), lambda b, s: (0, 0)),     # packed conv b
            pl.BlockSpec((6 * Fp, H), lambda b, s: (0, 0)),     # dense W (padded)
            pl.BlockSpec((1, H), lambda b, s: (0, 0)),          # dense b
        ],
        out_specs=pl.BlockSpec((Bt, H), lambda b, s: (b, 0)),
    )
    out = pl.pallas_call(
        fused_kernel,
        out_shape=jax.ShapeDtypeStruct((B_pad, H), jnp.float32),
        grid_spec=grid_spec,
        compiler_params=pltpu.CompilerParams(
            dimension_semantics=("parallel",)),
    )(flag, lv, rv, lm_col, rm_col, rm_row, wc, bc, dwp, db)
    return out[:B]


def init_params(key, dim, filters=100, dense_hidden=60):
    ks = jax.random.split(key, 8)

    def u(k, shape, fan_in):
        bound = 1.0 / float(fan_in) ** 0.5
        return jax.random.uniform(k, shape, jnp.float32, -bound, bound)

    return dict(
        conv_w1=u(ks[0], (dim, filters), dim),
        conv_b1=u(ks[1], (1, filters), dim),
        conv_w2=u(ks[2], (2 * dim, filters), 2 * dim),
        conv_b2=u(ks[3], (1, filters), 2 * dim),
        conv_w3=u(ks[4], (3 * dim, filters), 3 * dim),
        conv_b3=u(ks[5], (1, filters), 3 * dim),
        dense_w=u(ks[6], (6 * filters, dense_hidden), 6 * filters),
        dense_b=u(ks[7], (1, dense_hidden), 6 * filters),
    )


if __name__ == "__main__":
    key = jax.random.PRNGKey(0)
    B, L, R, D = 2, 8, 8, 16
    k_l, k_r, k_p = jax.random.split(key, 3)

    l_vectors = jax.random.normal(k_l, (L, B, D), jnp.float32)   # seq-first (PyTorch)
    r_vectors = jax.random.normal(k_r, (R, B, D), jnp.float32)
    l_lengths = jnp.array([L, 5], jnp.int32)                     # max == L (pad_sequence)
    r_lengths = jnp.array([6, R], jnp.int32)                     # max == R

    params = init_params(k_p, D, filters=100, dense_hidden=60)

    out = seq2seq_difference(l_lengths, l_vectors, r_lengths, r_vectors, params)
    out = jax.block_until_ready(out)
    assert out.shape == (B, 60) and out.dtype == jnp.float32
    assert bool(jnp.all(jnp.isfinite(out)))
    print("KERNEL_OK")
</pallas_src>

<mosaic_0001>
module attributes {stable_mosaic.version = 11 : i64} {
  func.func @fused_kernel(%arg0: i32, %arg1: memref<1xi32, #tpu.memory_space<smem>>, %arg2: memref<2x8x16xf32, #tpu.memory_space<vmem>>, %arg3: memref<2x8x16xf32, #tpu.memory_space<vmem>>, %arg4: memref<2x8x1xf32, #tpu.memory_space<vmem>>, %arg5: memref<2x8x1xf32, #tpu.memory_space<vmem>>, %arg6: memref<2x1x8xf32, #tpu.memory_space<vmem>>, %arg7: memref<16x768xbf16, #tpu.memory_space<vmem>>, %arg8: memref<1x384xf32, #tpu.memory_space<vmem>>, %arg9: memref<768x60xf32, #tpu.memory_space<vmem>>, %arg10: memref<1x60xf32, #tpu.memory_space<vmem>>, %arg11: memref<2x60xf32, #tpu.memory_space<vmem>>) attributes {dimension_semantics = [#tpu.dimension_semantics<parallel>], iteration_bounds = array<i64: 1>, scalar_prefetch = 1 : i64, scratch_operands = 0 : i64, tpu.core_type = #tpu.core_type<tc>, window_params = [{transform_indices = @transform_0, window_bounds = array<i64: 2, 8, 16>}, {transform_indices = @transform_1, window_bounds = array<i64: 2, 8, 16>}, {transform_indices = @transform_2, window_bounds = array<i64: 2, 8, 1>}, {transform_indices = @transform_3, window_bounds = array<i64: 2, 8, 1>}, {transform_indices = @transform_4, window_bounds = array<i64: 2, 1, 8>}, {pipeline_mode = #tpu.pipeline_mode<synchronous>, transform_indices = @transform_5, window_bounds = array<i64: 16, 768>}, {pipeline_mode = #tpu.pipeline_mode<synchronous>, transform_indices = @transform_6, window_bounds = array<i64: 1, 384>}, {pipeline_mode = #tpu.pipeline_mode<synchronous>, transform_indices = @transform_7, window_bounds = array<i64: 768, 60>}, {pipeline_mode = #tpu.pipeline_mode<synchronous>, transform_indices = @transform_8, window_bounds = array<i64: 1, 60>}, {transform_indices = @transform_9, window_bounds = array<i64: 2, 60>}]} {
    %c0 = arith.constant 0 : index
    %c0_0 = arith.constant 0 : index
    %c0_1 = arith.constant 0 : index
    %0 = vector.load %arg2[%c0, %c0_0, %c0_1] : memref<2x8x16xf32, #tpu.memory_space<vmem>>, vector<2x8x16xf32>
    %c0_2 = arith.constant 0 : index
    %c0_3 = arith.constant 0 : index
    %c0_4 = arith.constant 0 : index
    %1 = vector.load %arg3[%c0_2, %c0_3, %c0_4] : memref<2x8x16xf32, #tpu.memory_space<vmem>>, vector<2x8x16xf32>
    %c0_5 = arith.constant 0 : index
    %c0_6 = arith.constant 0 : index
    %c0_7 = arith.constant 0 : index
    %2 = vector.load %arg4[%c0_5, %c0_6, %c0_7] : memref<2x8x1xf32, #tpu.memory_space<vmem>>, vector<2x8x1xf32>
    %c0_8 = arith.constant 0 : index
    %c0_9 = arith.constant 0 : index
    %c0_10 = arith.constant 0 : index
    %3 = vector.load %arg5[%c0_8, %c0_9, %c0_10] : memref<2x8x1xf32, #tpu.memory_space<vmem>>, vector<2x8x1xf32>
    %c0_11 = arith.constant 0 : index
    %c0_12 = arith.constant 0 : index
    %c0_13 = arith.constant 0 : index
    %4 = vector.load %arg6[%c0_11, %c0_12, %c0_13] : memref<2x1x8xf32, #tpu.memory_space<vmem>>, vector<2x1x8xf32>
    %cst = arith.constant dense<0.000000e+00> : vector<2x1xf32>
    %5 = vector.multi_reduction <add>, %2, %cst [1] : vector<2x8x1xf32> to vector<2x1xf32>
    %6 = vector.shape_cast %5 : vector<2x1xf32> to vector<2x1x1xf32>
    %cst_14 = arith.constant dense<0.000000e+00> : vector<2x1xf32>
    %7 = vector.multi_reduction <add>, %3, %cst_14 [1] : vector<2x8x1xf32> to vector<2x1xf32>
    %8 = vector.shape_cast %7 : vector<2x1xf32> to vector<2x1x1xf32>
    %9 = arith.truncf %0 : vector<2x8x16xf32> to vector<2x8x16xbf16>
    %10 = arith.truncf %1 : vector<2x8x16xf32> to vector<2x8x16xbf16>
    "tpu.trace_start"() <{level = 10 : i32, message = "bld,brd->blr"}> : () -> ()
    %cst_15 = arith.constant dense<0.000000e+00> : vector<2x8x8xf32>
    %11 = tpu.matmul %9, %10, %cst_15 {dimension_numbers = #tpu.dot_dimension_numbers<[2], [2], [1], [1], [0, 0, 0, 1, 1, 1], [0], [0]>} : vector<2x8x16xbf16>, vector<2x8x16xbf16>, vector<2x8x8xf32> -> vector<2x8x8xf32>
    "tpu.trace_stop"() : () -> ()
    %12 = vector.broadcast %2 : vector<2x8x1xf32> to vector<2x8x8xf32>
    %13 = arith.mulf %11, %12 : vector<2x8x8xf32>
    %14 = vector.broadcast %4 : vector<2x1x8xf32> to vector<2x8x8xf32>
    %15 = arith.mulf %13, %14 : vector<2x8x8xf32>
    %cst_16 = arith.constant 1.000000e+00 : f32
    %16 = vector.broadcast %cst_16 : f32 to vector<2x8x1xf32>
    %17 = arith.subf %16, %2 : vector<2x8x1xf32>
    %cst_17 = arith.constant 1.000000e+01 : f32
    %18 = vector.broadcast %cst_17 : f32 to vector<2x8x1xf32>
    %19 = arith.mulf %18, %17 : vector<2x8x1xf32>
    %20 = vector.broadcast %19 : vector<2x8x1xf32> to vector<2x8x8xf32>
    %21 = arith.subf %15, %20 : vector<2x8x8xf32>
    %cst_18 = arith.constant dense<0xFF800000> : vector<2x8xf32>
    %22 = vector.multi_reduction <maximumf>, %21, %cst_18 [1] : vector<2x8x8xf32> to vector<2x8xf32>
    %23 = vector.shape_cast %22 : vector<2x8xf32> to vector<2x1x8xf32>
    %24 = vector.broadcast %23 : vector<2x1x8xf32> to vector<2x8x8xf32>
    %25 = arith.subf %21, %24 : vector<2x8x8xf32>
    %26 = math.exp %25 : vector<2x8x8xf32>
    %cst_19 = arith.constant dense<0.000000e+00> : vector<2x8xf32>
    %27 = vector.multi_reduction <add>, %26, %cst_19 [1] : vector<2x8x8xf32> to vector<2x8xf32>
    %28 = vector.shape_cast %27 : vector<2x8xf32> to vector<2x1x8xf32>
    %29 = tpu.reciprocal %28 {approx = true} : vector<2x1x8xf32> -> vector<2x1x8xf32>
    %30 = vector.broadcast %29 : vector<2x1x8xf32> to vector<2x8x8xf32>
    %31 = arith.mulf %26, %30 : vector<2x8x8xf32>
    %32 = vector.broadcast %2 : vector<2x8x1xf32> to vector<2x8x8xf32>
    %33 = arith.mulf %31, %32 : vector<2x8x8xf32>
    %cst_20 = arith.constant dense<0.000000e+00> : vector<2x8xf32>
    %34 = vector.multi_reduction <add>, %33, %cst_20 [1] : vector<2x8x8xf32> to vector<2x8xf32>
    %35 = vector.shape_cast %34 : vector<2x8xf32> to vector<2x1x8xf32>
    %cst_21 = arith.constant 9.99999982E-14 : f32
    %36 = vector.broadcast %cst_21 : f32 to vector<2x1x8xf32>
    %37 = arith.addf %35, %36 : vector<2x1x8xf32>
    %38 = tpu.reciprocal %37 {approx = true} : vector<2x1x8xf32> -> vector<2x1x8xf32>
    %39 = vector.broadcast %38 : vector<2x1x8xf32> to vector<2x8x8xf32>
    %40 = arith.mulf %33, %39 : vector<2x8x8xf32>
    %cst_22 = arith.constant 1.000000e+00 : f32
    %41 = vector.broadcast %cst_22 : f32 to vector<2x1x8xf32>
    %42 = arith.subf %41, %4 : vector<2x1x8xf32>
    %cst_23 = arith.constant 1.000000e+01 : f32
    %43 = vector.broadcast %cst_23 : f32 to vector<2x1x8xf32>
    %44 = arith.mulf %43, %42 : vector<2x1x8xf32>
    %45 = vector.broadcast %44 : vector<2x1x8xf32> to vector<2x8x8xf32>
    %46 = arith.subf %15, %45 : vector<2x8x8xf32>
    %cst_24 = arith.constant dense<0xFF800000> : vector<2x8xf32>
    %47 = vector.multi_reduction <maximumf>, %46, %cst_24 [2] : vector<2x8x8xf32> to vector<2x8xf32>
    %48 = vector.shape_cast %47 : vector<2x8xf32> to vector<2x8x1xf32>
    %49 = vector.broadcast %48 : vector<2x8x1xf32> to vector<2x8x8xf32>
    %50 = arith.subf %46, %49 : vector<2x8x8xf32>
    %51 = math.exp %50 : vector<2x8x8xf32>
    %cst_25 = arith.constant dense<0.000000e+00> : vector<2x8xf32>
    %52 = vector.multi_reduction <add>, %51, %cst_25 [2] : vector<2x8x8xf32> to vector<2x8xf32>
    %53 = vector.shape_cast %52 : vector<2x8xf32> to vector<2x8x1xf32>
    %54 = tpu.reciprocal %53 {approx = true} : vector<2x8x1xf32> -> vector<2x8x1xf32>
    %55 = vector.broadcast %54 : vector<2x8x1xf32> to vector<2x8x8xf32>
    %56 = arith.mulf %51, %55 : vector<2x8x8xf32>
    %57 = vector.broadcast %4 : vector<2x1x8xf32> to vector<2x8x8xf32>
    %58 = arith.mulf %56, %57 : vector<2x8x8xf32>
    %cst_26 = arith.constant dense<0.000000e+00> : vector<2x8xf32>
    %59 = vector.multi_reduction <add>, %58, %cst_26 [2] : vector<2x8x8xf32> to vector<2x8xf32>
    %60 = vector.shape_cast %59 : vector<2x8xf32> to vector<2x8x1xf32>
    %cst_27 = arith.constant 9.99999982E-14 : f32
    %61 = vector.broadcast %cst_27 : f32 to vector<2x8x1xf32>
    %62 = arith.addf %60, %61 : vector<2x8x1xf32>
    %63 = tpu.reciprocal %62 {approx = true} : vector<2x8x1xf32> -> vector<2x8x1xf32>
    %64 = vector.broadcast %63 : vector<2x8x1xf32> to vector<2x8x8xf32>
    %65 = arith.mulf %58, %64 : vector<2x8x8xf32>
    %66 = tpu.iota {dimensions = array<i32: 2>} : vector<2x8x8xi32>
    %67 = tpu.iota {dimensions = array<i32: 1>} : vector<2x8x8xi32>
    %68 = tpu.reciprocal %8 {approx = true} : vector<2x1x1xf32> -> vector<2x1x1xf32>
    %cst_28 = arith.constant dense<0.000000e+00> : vector<2x8xf32>
    %69 = vector.multi_reduction <add>, %65, %cst_28 [2] : vector<2x8x8xf32> to vector<2x8xf32>
    %70 = vector.shape_cast %69 : vector<2x8xf32> to vector<2x8x1xf32>
    %71 = vector.broadcast %68 : vector<2x1x1xf32> to vector<2x8x1xf32>
    %72 = arith.mulf %70, %71 : vector<2x8x1xf32>
    %73 = arith.mulf %65, %65 : vector<2x8x8xf32>
    %cst_29 = arith.constant dense<0.000000e+00> : vector<2x8xf32>
    %74 = vector.multi_reduction <add>, %73, %cst_29 [2] : vector<2x8x8xf32> to vector<2x8xf32>
    %75 = vector.shape_cast %74 : vector<2x8xf32> to vector<2x8x1xf32>
    %76 = vector.broadcast %68 : vector<2x1x1xf32> to vector<2x8x1xf32>
    %77 = arith.mulf %75, %76 : vector<2x8x1xf32>
    %78 = arith.mulf %72, %72 : vector<2x8x1xf32>
    %79 = arith.subf %77, %78 : vector<2x8x1xf32>
    %cst_30 = arith.constant 1.000000e-03 : f32
    %80 = vector.broadcast %cst_30 : f32 to vector<2x8x1xf32>
    %81 = arith.maximumf %72, %80 : vector<2x8x1xf32>
    %82 = tpu.reciprocal %81 {approx = true} : vector<2x8x1xf32> -> vector<2x8x1xf32>
    %83 = arith.mulf %79, %82 : vector<2x8x1xf32>
    %cst_31 = arith.constant dense<0xFF800000> : vector<2x8xf32>
    %84 = vector.multi_reduction <maximumf>, %65, %cst_31 [2] : vector<2x8x8xf32> to vector<2x8xf32>
    %85 = vector.shape_cast %84 : vector<2x8xf32> to vector<2x8x1xf32>
    %86 = vector.broadcast %85 : vector<2x8x1xf32> to vector<2x8x8xf32>
    %87 = arith.cmpf oeq, %65, %86 : vector<2x8x8xf32>
    %c8_i32 = arith.constant 8 : i32
    %88 = vector.broadcast %c8_i32 : i32 to vector<2x8x8xi32>
    %89 = arith.select %87, %66, %88 : vector<2x8x8xi1>, vector<2x8x8xi32>
    %cst_32 = arith.constant dense<2147483647> : vector<2x8xi32>
    %90 = vector.multi_reduction <minsi>, %89, %cst_32 [2] : vector<2x8x8xi32> to vector<2x8xi32>
    %91 = vector.shape_cast %90 : vector<2x8xi32> to vector<2x8x1xi32>
    %92 = arith.fptosi %2 : vector<2x8x1xf32> to vector<2x8x1xi32>
    %93 = arith.muli %91, %92 : vector<2x8x1xi32>
    %cst_33 = arith.constant 1.000000e-03 : f32
    %94 = vector.broadcast %cst_33 : f32 to vector<2x8x1xf32>
    %95 = arith.maximumf %85, %94 : vector<2x8x1xf32>
    %96 = tpu.reciprocal %95 {approx = true} : vector<2x8x1xf32> -> vector<2x8x1xf32>
    %97 = arith.mulf %85, %96 : vector<2x8x1xf32>
    %98 = vector.broadcast %93 : vector<2x8x1xi32> to vector<2x8x8xi32>
    %99 = arith.cmpi eq, %66, %98 : vector<2x8x8xi32>
    %100 = arith.extui %99 : vector<2x8x8xi1> to vector<2x8x8xi32>
    %101 = arith.sitofp %100 : vector<2x8x8xi32> to vector<2x8x8xf32>
    %102 = vector.broadcast %97 : vector<2x8x1xf32> to vector<2x8x8xf32>
    %103 = arith.mulf %101, %102 : vector<2x8x8xf32>
    "tpu.trace_start"() <{level = 10 : i32, message = "blr,brd->bld"}> : () -> ()
    %cst_34 = arith.constant dense<0.000000e+00> : vector<2x8x16xf32>
    %104 = tpu.matmul %103, %1, %cst_34 {dimension_numbers = #tpu.dot_dimension_numbers<[2], [1], [1], [2], [0, 0, 0, 1, 1, 2], [0], [0]>} : vector<2x8x8xf32>, vector<2x8x16xf32>, vector<2x8x16xf32> -> vector<2x8x16xf32>
    "tpu.trace_stop"() : () -> ()
    %105 = arith.subf %0, %104 : vector<2x8x16xf32>
    %106 = math.absf %105 : vector<2x8x16xf32>
    %107 = vector.broadcast %83 : vector<2x8x1xf32> to vector<2x8x16xf32>
    %108 = arith.mulf %107, %106 : vector<2x8x16xf32>
    %109 = vector.broadcast %2 : vector<2x8x1xf32> to vector<2x8x16xf32>
    %110 = arith.mulf %108, %109 : vector<2x8x16xf32>
    %111 = tpu.reciprocal %6 {approx = true} : vector<2x1x1xf32> -> vector<2x1x1xf32>
    %cst_35 = arith.constant dense<0.000000e+00> : vector<2x8xf32>
    %112 = vector.multi_reduction <add>, %40, %cst_35 [1] : vector<2x8x8xf32> to vector<2x8xf32>
    %113 = vector.shape_cast %112 : vector<2x8xf32> to vector<2x1x8xf32>
    %114 = vector.broadcast %111 : vector<2x1x1xf32> to vector<2x1x8xf32>
    %115 = arith.mulf %113, %114 : vector<2x1x8xf32>
    %116 = arith.mulf %40, %40 : vector<2x8x8xf32>
    %cst_36 = arith.constant dense<0.000000e+00> : vector<2x8xf32>
    %117 = vector.multi_reduction <add>, %116, %cst_36 [1] : vector<2x8x8xf32> to vector<2x8xf32>
    %118 = vector.shape_cast %117 : vector<2x8xf32> to vector<2x1x8xf32>
    %119 = vector.broadcast %111 : vector<2x1x1xf32> to vector<2x1x8xf32>
    %120 = arith.mulf %118, %119 : vector<2x1x8xf32>
    %121 = arith.mulf %115, %115 : vector<2x1x8xf32>
    %122 = arith.subf %120, %121 : vector<2x1x8xf32>
    %cst_37 = arith.constant 1.000000e-03 : f32
    %123 = vector.broadcast %cst_37 : f32 to vector<2x1x8xf32>
    %124 = arith.maximumf %115, %123 : vector<2x1x8xf32>
    %125 = tpu.reciprocal %124 {approx = true} : vector<2x1x8xf32> -> vector<2x1x8xf32>
    %126 = arith.mulf %122, %125 : vector<2x1x8xf32>
    %cst_38 = arith.constant dense<0xFF800000> : vector<2x8xf32>
    %127 = vector.multi_reduction <maximumf>, %40, %cst_38 [1] : vector<2x8x8xf32> to vector<2x8xf32>
    %128 = vector.shape_cast %127 : vector<2x8xf32> to vector<2x1x8xf32>
    %129 = vector.broadcast %128 : vector<2x1x8xf32> to vector<2x8x8xf32>
    %130 = arith.cmpf oeq, %40, %129 : vector<2x8x8xf32>
    %c8_i32_39 = arith.constant 8 : i32
    %131 = vector.broadcast %c8_i32_39 : i32 to vector<2x8x8xi32>
    %132 = arith.select %130, %67, %131 : vector<2x8x8xi1>, vector<2x8x8xi32>
    %cst_40 = arith.constant dense<2147483647> : vector<2x8xi32>
    %133 = vector.multi_reduction <minsi>, %132, %cst_40 [1] : vector<2x8x8xi32> to vector<2x8xi32>
    %134 = vector.shape_cast %133 : vector<2x8xi32> to vector<2x1x8xi32>
    %135 = arith.fptosi %4 : vector<2x1x8xf32> to vector<2x1x8xi32>
    %136 = arith.muli %134, %135 : vector<2x1x8xi32>
    %cst_41 = arith.constant 1.000000e-03 : f32
    %137 = vector.broadcast %cst_41 : f32 to vector<2x1x8xf32>
    %138 = arith.maximumf %128, %137 : vector<2x1x8xf32>
    %139 = tpu.reciprocal %138 {approx = true} : vector<2x1x8xf32> -> vector<2x1x8xf32>
    %140 = arith.mulf %128, %139 : vector<2x1x8xf32>
    %141 = vector.broadcast %136 : vector<2x1x8xi32> to vector<2x8x8xi32>
    %142 = arith.cmpi eq, %67, %141 : vector<2x8x8xi32>
    %143 = arith.extui %142 : vector<2x8x8xi1> to vector<2x8x8xi32>
    %144 = arith.sitofp %143 : vector<2x8x8xi32> to vector<2x8x8xf32>
    %145 = vector.broadcast %140 : vector<2x1x8xf32> to vector<2x8x8xf32>
    %146 = arith.mulf %144, %145 : vector<2x8x8xf32>
    "tpu.trace_start"() <{level = 10 : i32, message = "blr,bld->brd"}> : () -> ()
    %cst_42 = arith.constant dense<0.000000e+00> : vector<2x8x16xf32>
    %147 = tpu.matmul %146, %0, %cst_42 {dimension_numbers = #tpu.dot_dimension_numbers<[1], [1], [2], [2], [0, 0, 0, 2, 1, 2], [0], [0]>} : vector<2x8x8xf32>, vector<2x8x16xf32>, vector<2x8x16xf32> -> vector<2x8x16xf32>
    "tpu.trace_stop"() : () -> ()
    %148 = tpu.iota {dimensions = array<i32: 0>} : vector<8x8xi32>
    %149 = tpu.iota {dimensions = array<i32: 1>} : vector<8x8xi32>
    %150 = arith.cmpi eq, %148, %149 : vector<8x8xi32>
    %151 = arith.extui %150 : vector<8x8xi1> to vector<8x8xi32>
    %152 = arith.sitofp %151 : vector<8x8xi32> to vector<8x8xf32>
    %153 = vector.shape_cast %152 : vector<8x8xf32> to vector<1x8x8xf32>
    %154 = vector.broadcast %153 : vector<1x8x8xf32> to vector<2x8x8xf32>
    %155 = vector.broadcast %126 : vector<2x1x8xf32> to vector<2x8x8xf32>
    %156 = arith.mulf %154, %155 : vector<2x8x8xf32>
    %cst_43 = arith.constant dense<0.000000e+00> : vector<2x8xf32>
    %157 = vector.multi_reduction <add>, %156, %cst_43 [2] : vector<2x8x8xf32> to vector<2x8xf32>
    %158 = vector.shape_cast %157 : vector<2x8xf32> to vector<2x8x1xf32>
    %159 = arith.subf %1, %147 : vector<2x8x16xf32>
    %160 = math.absf %159 : vector<2x8x16xf32>
    %161 = vector.broadcast %158 : vector<2x8x1xf32> to vector<2x8x16xf32>
    %162 = arith.mulf %161, %160 : vector<2x8x16xf32>
    %163 = vector.broadcast %3 : vector<2x8x1xf32> to vector<2x8x16xf32>
    %164 = arith.mulf %162, %163 : vector<2x8x16xf32>
    %c0_44 = arith.constant 0 : index
    %c0_45 = arith.constant 0 : index
    %165 = vector.load %arg7[%c0_44, %c0_45] : memref<16x768xbf16, #tpu.memory_space<vmem>>, vector<16x768xbf16>
    %c0_46 = arith.constant 0 : index
    %c0_47 = arith.constant 0 : index
    %166 = vector.load %arg8[%c0_46, %c0_47] : memref<1x384xf32, #tpu.memory_space<vmem>>, vector<1x384xf32>
    %167 = vector.shape_cast %110 : vector<2x8x16xf32> to vector<16x16xf32>
    %168 = arith.truncf %167 : vector<16x16xf32> to vector<16x16xbf16>
    %cst_48 = arith.constant dense<0.000000e+00> : vector<16x768xf32>
    %169 = tpu.matmul %168, %165, %cst_48 {dimension_numbers = #tpu.dot_dimension_numbers<[1], [0], [0], [1], [0, 0, 1, 1], [], []>} : vector<16x16xbf16>, vector<16x768xbf16>, vector<16x768xf32> -> vector<16x768xf32>
    %170 = tpu.iota {dimensions = array<i32: 1>} : vector<2x8x1xi32>
    %171 = arith.fptosi %6 : vector<2x1x1xf32> to vector<2x1x1xi32>
    %172 = vector.extract_strided_slice %169 {offsets = [0, 0], sizes = [16, 128], strides = [1, 1]} : vector<16x768xf32> to vector<16x128xf32>
    %173 = vector.shape_cast %172 : vector<16x128xf32> to vector<2x8x128xf32>
    %174 = vector.extract_strided_slice %166 {offsets = [0, 0], sizes = [1, 128], strides = [1, 1]} : vector<1x384xf32> to vector<1x128xf32>
    %175 = vector.shape_cast %174 : vector<1x128xf32> to vector<1x1x128xf32>
    %176 = vector.broadcast %175 : vector<1x1x128xf32> to vector<2x8x128xf32>
    %177 = arith.addf %173, %176 : vector<2x8x128xf32>
    %cst_49 = arith.constant 0.000000e+00 : f32
    %178 = vector.broadcast %cst_49 : f32 to vector<2x8x128xf32>
    %179 = arith.maximumf %177, %178 : vector<2x8x128xf32>
    %180 = vector.broadcast %171 : vector<2x1x1xi32> to vector<2x8x1xi32>
    %181 = arith.cmpi slt, %170, %180 : vector<2x8x1xi32>
    %182 = arith.extui %181 : vector<2x8x1xi1> to vector<2x8x1xi32>
    %183 = arith.sitofp %182 : vector<2x8x1xi32> to vector<2x8x1xf32>
    %184 = vector.broadcast %183 : vector<2x8x1xf32> to vector<2x8x128xf32>
    %185 = arith.mulf %179, %184 : vector<2x8x128xf32>
    %cst_50 = arith.constant dense<0xFF800000> : vector<2x128xf32>
    %186 = vector.multi_reduction <maximumf>, %185, %cst_50 [1] : vector<2x8x128xf32> to vector<2x128xf32>
    %187 = vector.extract_strided_slice %169 {offsets = [0, 128], sizes = [16, 128], strides = [1, 1]} : vector<16x768xf32> to vector<16x128xf32>
    %188 = vector.shape_cast %187 : vector<16x128xf32> to vector<2x8x128xf32>
    %189 = vector.extract_strided_slice %169 {offsets = [0, 256], sizes = [16, 128], strides = [1, 1]} : vector<16x768xf32> to vector<16x128xf32>
    %c15_i32 = arith.constant 15 : i32
    %190 = tpu.dynamic_rotate %189 by %c15_i32 dim 0 : vector<16x128xf32>, i32 -> vector<16x128xf32>
    %191 = vector.shape_cast %190 : vector<16x128xf32> to vector<2x8x128xf32>
    %192 = arith.addf %188, %191 : vector<2x8x128xf32>
    %193 = vector.extract_strided_slice %166 {offsets = [0, 128], sizes = [1, 128], strides = [1, 1]} : vector<1x384xf32> to vector<1x128xf32>
    %194 = vector.shape_cast %193 : vector<1x128xf32> to vector<1x1x128xf32>
    %195 = vector.broadcast %194 : vector<1x1x128xf32> to vector<2x8x128xf32>
    %196 = arith.addf %192, %195 : vector<2x8x128xf32>
    %cst_51 = arith.constant 0.000000e+00 : f32
    %197 = vector.broadcast %cst_51 : f32 to vector<2x8x128xf32>
    %198 = arith.maximumf %196, %197 : vector<2x8x128xf32>
    %c1_i32 = arith.constant 1 : i32
    %199 = vector.broadcast %c1_i32 : i32 to vector<2x1x1xi32>
    %200 = arith.subi %171, %199 : vector<2x1x1xi32>
    %201 = vector.broadcast %200 : vector<2x1x1xi32> to vector<2x8x1xi32>
    %202 = arith.cmpi slt, %170, %201 : vector<2x8x1xi32>
    %203 = arith.extui %202 : vector<2x8x1xi1> to vector<2x8x1xi32>
    %204 = arith.sitofp %203 : vector<2x8x1xi32> to vector<2x8x1xf32>
    %205 = vector.broadcast %204 : vector<2x8x1xf32> to vector<2x8x128xf32>
    %206 = arith.mulf %198, %205 : vector<2x8x128xf32>
    %cst_52 = arith.constant dense<0xFF800000> : vector<2x128xf32>
    %207 = vector.multi_reduction <maximumf>, %206, %cst_52 [1] : vector<2x8x128xf32> to vector<2x128xf32>
    %208 = vector.extract_strided_slice %169 {offsets = [0, 384], sizes = [16, 128], strides = [1, 1]} : vector<16x768xf32> to vector<16x128xf32>
    %209 = vector.shape_cast %208 : vector<16x128xf32> to vector<2x8x128xf32>
    %210 = vector.extract_strided_slice %169 {offsets = [0, 512], sizes = [16, 128], strides = [1, 1]} : vector<16x768xf32> to vector<16x128xf32>
    %c15_i32_53 = arith.constant 15 : i32
    %211 = tpu.dynamic_rotate %210 by %c15_i32_53 dim 0 : vector<16x128xf32>, i32 -> vector<16x128xf32>
    %212 = vector.shape_cast %211 : vector<16x128xf32> to vector<2x8x128xf32>
    %213 = arith.addf %209, %212 : vector<2x8x128xf32>
    %214 = vector.extract_strided_slice %169 {offsets = [0, 640], sizes = [16, 128], strides = [1, 1]} : vector<16x768xf32> to vector<16x128xf32>
    %c14_i32 = arith.constant 14 : i32
    %215 = tpu.dynamic_rotate %214 by %c14_i32 dim 0 : vector<16x128xf32>, i32 -> vector<16x128xf32>
    %216 = vector.shape_cast %215 : vector<16x128xf32> to vector<2x8x128xf32>
    %217 = arith.addf %213, %216 : vector<2x8x128xf32>
    %218 = vector.extract_strided_slice %166 {offsets = [0, 256], sizes = [1, 128], strides = [1, 1]} : vector<1x384xf32> to vector<1x128xf32>
    %219 = vector.shape_cast %218 : vector<1x128xf32> to vector<1x1x128xf32>
    %220 = vector.broadcast %219 : vector<1x1x128xf32> to vector<2x8x128xf32>
    %221 = arith.addf %217, %220 : vector<2x8x128xf32>
    %cst_54 = arith.constant 0.000000e+00 : f32
    %222 = vector.broadcast %cst_54 : f32 to vector<2x8x128xf32>
    %223 = arith.maximumf %221, %222 : vector<2x8x128xf32>
    %c2_i32 = arith.constant 2 : i32
    %224 = vector.broadcast %c2_i32 : i32 to vector<2x1x1xi32>
    %225 = arith.subi %171, %224 : vector<2x1x1xi32>
    %226 = vector.broadcast %225 : vector<2x1x1xi32> to vector<2x8x1xi32>
    %227 = arith.cmpi slt, %170, %226 : vector<2x8x1xi32>
    %228 = arith.extui %227 : vector<2x8x1xi1> to vector<2x8x1xi32>
    %229 = arith.sitofp %228 : vector<2x8x1xi32> to vector<2x8x1xf32>
    %230 = vector.broadcast %229 : vector<2x8x1xf32> to vector<2x8x128xf32>
    %231 = arith.mulf %223, %230 : vector<2x8x128xf32>
    %cst_55 = arith.constant dense<0xFF800000> : vector<2x128xf32>
    %232 = vector.multi_reduction <maximumf>, %231, %cst_55 [1] : vector<2x8x128xf32> to vector<2x128xf32>
    %233 = vector.shape_cast %164 : vector<2x8x16xf32> to vector<16x16xf32>
    %234 = arith.truncf %233 : vector<16x16xf32> to vector<16x16xbf16>
    %cst_56 = arith.constant dense<0.000000e+00> : vector<16x768xf32>
    %235 = tpu.matmul %234, %165, %cst_56 {dimension_numbers = #tpu.dot_dimension_numbers<[1], [0], [0], [1], [0, 0, 1, 1], [], []>} : vector<16x16xbf16>, vector<16x768xbf16>, vector<16x768xf32> -> vector<16x768xf32>
    %236 = tpu.iota {dimensions = array<i32: 1>} : vector<2x8x1xi32>
    %237 = arith.fptosi %8 : vector<2x1x1xf32> to vector<2x1x1xi32>
    %238 = vector.extract_strided_slice %235 {offsets = [0, 0], sizes = [16, 128], strides = [1, 1]} : vector<16x768xf32> to vector<16x128xf32>
    %239 = vector.shape_cast %238 : vector<16x128xf32> to vector<2x8x128xf32>
    %240 = vector.extract_strided_slice %166 {offsets = [0, 0], sizes = [1, 128], strides = [1, 1]} : vector<1x384xf32> to vector<1x128xf32>
    %241 = vector.shape_cast %240 : vector<1x128xf32> to vector<1x1x128xf32>
    %242 = vector.broadcast %241 : vector<1x1x128xf32> to vector<2x8x128xf32>
    %243 = arith.addf %239, %242 : vector<2x8x128xf32>
    %cst_57 = arith.constant 0.000000e+00 : f32
    %244 = vector.broadcast %cst_57 : f32 to vector<2x8x128xf32>
    %245 = arith.maximumf %243, %244 : vector<2x8x128xf32>
    %246 = vector.broadcast %237 : vector<2x1x1xi32> to vector<2x8x1xi32>
    %247 = arith.cmpi slt, %236, %246 : vector<2x8x1xi32>
    %248 = arith.extui %247 : vector<2x8x1xi1> to vector<2x8x1xi32>
    %249 = arith.sitofp %248 : vector<2x8x1xi32> to vector<2x8x1xf32>
    %250 = vector.broadcast %249 : vector<2x8x1xf32> to vector<2x8x128xf32>
    %251 = arith.mulf %245, %250 : vector<2x8x128xf32>
    %cst_58 = arith.constant dense<0xFF800000> : vector<2x128xf32>
    %252 = vector.multi_reduction <maximumf>, %251, %cst_58 [1] : vector<2x8x128xf32> to vector<2x128xf32>
    %253 = vector.extract_strided_slice %235 {offsets = [0, 128], sizes = [16, 128], strides = [1, 1]} : vector<16x768xf32> to vector<16x128xf32>
    %254 = vector.shape_cast %253 : vector<16x128xf32> to vector<2x8x128xf32>
    %255 = vector.extract_strided_slice %235 {offsets = [0, 256], sizes = [16, 128], strides = [1, 1]} : vector<16x768xf32> to vector<16x128xf32>
    %c15_i32_59 = arith.constant 15 : i32
    %256 = tpu.dynamic_rotate %255 by %c15_i32_59 dim 0 : vector<16x128xf32>, i32 -> vector<16x128xf32>
    %257 = vector.shape_cast %256 : vector<16x128xf32> to vector<2x8x128xf32>
    %258 = arith.addf %254, %257 : vector<2x8x128xf32>
    %259 = vector.extract_strided_slice %166 {offsets = [0, 128], sizes = [1, 128], strides = [1, 1]} : vector<1x384xf32> to vector<1x128xf32>
    %260 = vector.shape_cast %259 : vector<1x128xf32> to vector<1x1x128xf32>
    %261 = vector.broadcast %260 : vector<1x1x128xf32> to vector<2x8x128xf32>
    %262 = arith.addf %258, %261 : vector<2x8x128xf32>
    %cst_60 = arith.constant 0.000000e+00 : f32
    %263 = vector.broadcast %cst_60 : f32 to vector<2x8x128xf32>
    %264 = arith.maximumf %262, %263 : vector<2x8x128xf32>
    %c1_i32_61 = arith.constant 1 : i32
    %265 = vector.broadcast %c1_i32_61 : i32 to vector<2x1x1xi32>
    %266 = arith.subi %237, %265 : vector<2x1x1xi32>
    %267 = vector.broadcast %266 : vector<2x1x1xi32> to vector<2x8x1xi32>
    %268 = arith.cmpi slt, %236, %267 : vector<2x8x1xi32>
    %269 = arith.extui %268 : vector<2x8x1xi1> to vector<2x8x1xi32>
    %270 = arith.sitofp %269 : vector<2x8x1xi32> to vector<2x8x1xf32>
    %271 = vector.broadcast %270 : vector<2x8x1xf32> to vector<2x8x128xf32>
    %272 = arith.mulf %264, %271 : vector<2x8x128xf32>
    %cst_62 = arith.constant dense<0xFF800000> : vector<2x128xf32>
    %273 = vector.multi_reduction <maximumf>, %272, %cst_62 [1] : vector<2x8x128xf32> to vector<2x128xf32>
    %274 = vector.extract_strided_slice %235 {offsets = [0, 384], sizes = [16, 128], strides = [1, 1]} : vector<16x768xf32> to vector<16x128xf32>
    %275 = vector.shape_cast %274 : vector<16x128xf32> to vector<2x8x128xf32>
    %276 = vector.extract_strided_slice %235 {offsets = [0, 512], sizes = [16, 128], strides = [1, 1]} : vector<16x768xf32> to vector<16x128xf32>
    %c15_i32_63 = arith.constant 15 : i32
    %277 = tpu.dynamic_rotate %276 by %c15_i32_63 dim 0 : vector<16x128xf32>, i32 -> vector<16x128xf32>
    %278 = vector.shape_cast %277 : vector<16x128xf32> to vector<2x8x128xf32>
    %279 = arith.addf %275, %278 : vector<2x8x128xf32>
    %280 = vector.extract_strided_slice %235 {offsets = [0, 640], sizes = [16, 128], strides = [1, 1]} : vector<16x768xf32> to vector<16x128xf32>
    %c14_i32_64 = arith.constant 14 : i32
    %281 = tpu.dynamic_rotate %280 by %c14_i32_64 dim 0 : vector<16x128xf32>, i32 -> vector<16x128xf32>
    %282 = vector.shape_cast %281 : vector<16x128xf32> to vector<2x8x128xf32>
    %283 = arith.addf %279, %282 : vector<2x8x128xf32>
    %284 = vector.extract_strided_slice %166 {offsets = [0, 256], sizes = [1, 128], strides = [1, 1]} : vector<1x384xf32> to vector<1x128xf32>
    %285 = vector.shape_cast %284 : vector<1x128xf32> to vector<1x1x128xf32>
    %286 = vector.broadcast %285 : vector<1x1x128xf32> to vector<2x8x128xf32>
    %287 = arith.addf %283, %286 : vector<2x8x128xf32>
    %cst_65 = arith.constant 0.000000e+00 : f32
    %288 = vector.broadcast %cst_65 : f32 to vector<2x8x128xf32>
    %289 = arith.maximumf %287, %288 : vector<2x8x128xf32>
    %c2_i32_66 = arith.constant 2 : i32
    %290 = vector.broadcast %c2_i32_66 : i32 to vector<2x1x1xi32>
    %291 = arith.subi %237, %290 : vector<2x1x1xi32>
    %292 = vector.broadcast %291 : vector<2x1x1xi32> to vector<2x8x1xi32>
    %293 = arith.cmpi slt, %236, %292 : vector<2x8x1xi32>
    %294 = arith.extui %293 : vector<2x8x1xi1> to vector<2x8x1xi32>
    %295 = arith.sitofp %294 : vector<2x8x1xi32> to vector<2x8x1xf32>
    %296 = vector.broadcast %295 : vector<2x8x1xf32> to vector<2x8x128xf32>
    %297 = arith.mulf %289, %296 : vector<2x8x128xf32>
    %cst_67 = arith.constant dense<0xFF800000> : vector<2x128xf32>
    %298 = vector.multi_reduction <maximumf>, %297, %cst_67 [1] : vector<2x8x128xf32> to vector<2x128xf32>
    %299 = tpu.concatenate %186, %207, %232, %252, %273, %298 in 1 : vector<2x128xf32>, vector<2x128xf32>, vector<2x128xf32>, vector<2x128xf32>, vector<2x128xf32>, vector<2x128xf32> -> vector<2x768xf32>
    %c0_68 = arith.constant 0 : index
    %300 = memref.load %arg1[%c0_68] : memref<1xi32, #tpu.memory_space<smem>>
    %c0_i32 = arith.constant 0 : i32
    %301 = arith.cmpi ne, %300, %c0_i32 : i32
    %cst_69 = arith.constant 0.000000e+00 : f32
    %302 = vector.broadcast %cst_69 : f32 to vector<2x768xf32>
    %303 = arith.select %301, %302, %299 : vector<2x768xf32>
    %c0_70 = arith.constant 0 : index
    %c0_71 = arith.constant 0 : index
    %304 = vector.load %arg9[%c0_70, %c0_71] : memref<768x60xf32, #tpu.memory_space<vmem>>, vector<768x60xf32>
    %cst_72 = arith.constant dense<0.000000e+00> : vector<2x60xf32>
    %305 = tpu.matmul %303, %304, %cst_72 {dimension_numbers = #tpu.dot_dimension_numbers<[1], [0], [0], [1], [0, 0, 1, 1], [], []>} : vector<2x768xf32>, vector<768x60xf32>, vector<2x60xf32> -> vector<2x60xf32>
    %c0_73 = arith.constant 0 : index
    %c0_74 = arith.constant 0 : index
    %306 = vector.load %arg10[%c0_73, %c0_74] : memref<1x60xf32, #tpu.memory_space<vmem>>, vector<1x60xf32>
    %307 = vector.broadcast %306 : vector<1x60xf32> to vector<2x60xf32>
    %308 = arith.addf %305, %307 : vector<2x60xf32>
    %cst_75 = arith.constant 0.000000e+00 : f32
    %309 = vector.broadcast %cst_75 : f32 to vector<2x60xf32>
    %310 = arith.maximumf %308, %309 : vector<2x60xf32>
    %c0_76 = arith.constant 0 : index
    %c0_77 = arith.constant 0 : index
    %311 = vector.load %arg11[%c0_76, %c0_77] : memref<2x60xf32, #tpu.memory_space<vmem>>, vector<2x60xf32>
    tpu.vector_store %arg11[%c0_76, %c0_77], %310 {strides = array<i32>} : memref<2x60xf32, #tpu.memory_space<vmem>>, vector<2x60xf32>,
    return
  }
  func.func @transform_0(%arg0: i32, %arg1: memref<1xi32, #tpu.memory_space<smem>>) -> (i32, i32, i32) {
    %c0_i32 = arith.constant 0 : i32
    %c0_i32_0 = arith.constant 0 : i32
    %c0_i32_1 = arith.constant 0 : i32
    return %arg0, %c0_i32, %c0_i32_0 : i32, i32, i32
  }
  func.func @transform_1(%arg0: i32, %arg1: memref<1xi32, #tpu.memory_space<smem>>) -> (i32, i32, i32) {
    %c0_i32 = arith.constant 0 : i32
    %c0_i32_0 = arith.constant 0 : i32
    %c0_i32_1 = arith.constant 0 : i32
    return %arg0, %c0_i32, %c0_i32_0 : i32, i32, i32
  }
  func.func @transform_2(%arg0: i32, %arg1: memref<1xi32, #tpu.memory_space<smem>>) -> (i32, i32, i32) {
    %c0_i32 = arith.constant 0 : i32
    %c0_i32_0 = arith.constant 0 : i32
    %c0_i32_1 = arith.constant 0 : i32
    return %arg0, %c0_i32, %c0_i32_0 : i32, i32, i32
  }
  func.func @transform_3(%arg0: i32, %arg1: memref<1xi32, #tpu.memory_space<smem>>) -> (i32, i32, i32) {
    %c0_i32 = arith.constant 0 : i32
    %c0_i32_0 = arith.constant 0 : i32
    %c0_i32_1 = arith.constant 0 : i32
    return %arg0, %c0_i32, %c0_i32_0 : i32, i32, i32
  }
  func.func @transform_4(%arg0: i32, %arg1: memref<1xi32, #tpu.memory_space<smem>>) -> (i32, i32, i32) {
    %c0_i32 = arith.constant 0 : i32
    %c0_i32_0 = arith.constant 0 : i32
    %c0_i32_1 = arith.constant 0 : i32
    return %arg0, %c0_i32, %c0_i32_0 : i32, i32, i32
  }
  func.func @transform_5(%arg0: i32, %arg1: memref<1xi32, #tpu.memory_space<smem>>) -> (i32, i32) {
    %c0_i32 = arith.constant 0 : i32
    %c0_i32_0 = arith.constant 0 : i32
    %c0_i32_1 = arith.constant 0 : i32
    return %c0_i32, %c0_i32_0 : i32, i32
  }
  func.func @transform_6(%arg0: i32, %arg1: memref<1xi32, #tpu.memory_space<smem>>) -> (i32, i32) {
    %c0_i32 = arith.constant 0 : i32
    %c0_i32_0 = arith.constant 0 : i32
    %c0_i32_1 = arith.constant 0 : i32
    return %c0_i32, %c0_i32_0 : i32, i32
  }
  func.func @transform_7(%arg0: i32, %arg1: memref<1xi32, #tpu.memory_space<smem>>) -> (i32, i32) {
    %c0_i32 = arith.constant 0 : i32
    %c0_i32_0 = arith.constant 0 : i32
    %c0_i32_1 = arith.constant 0 : i32
    return %c0_i32, %c0_i32_0 : i32, i32
  }
  func.func @transform_8(%arg0: i32, %arg1: memref<1xi32, #tpu.memory_space<smem>>) -> (i32, i32) {
    %c0_i32 = arith.constant 0 : i32
    %c0_i32_0 = arith.constant 0 : i32
    %c0_i32_1 = arith.constant 0 : i32
    return %c0_i32, %c0_i32_0 : i32, i32
  }
  func.func @transform_9(%arg0: i32, %arg1: memref<1xi32, #tpu.memory_space<smem>>) -> (i32, i32) {
    %c0_i32 = arith.constant 0 : i32
    %c0_i32_0 = arith.constant 0 : i32
    return %arg0, %c0_i32 : i32, i32
  }
}

</mosaic_0001>

<llo_original>
// kernel: seq2seq_difference.1
$region0: #{seq2seq_difference.1}
  #allocation0 [shape = 'u32[]', space=smem, size = 0x4, offset = 0x4, fixed_abs, tag = 'smem constant byte address 0x4 - core index']
  #allocation1 [shape = 'u32[144,128]{1,0:T(1,128)}', space=vmem, size = 0x12000, scoped, tag = 'internal scratch']
  #allocation2 [shape = 's32[1]{0}', space=sflag, size = 0x4, scoped, tag = 'scoped memory for seq2seq_difference.1']
  #allocation3 [shape = 's32[1]{0:T(128)S(6)}', space=smem, size = 0x200, scoped, tag = 'prefetched SMEM operand 0']
  %s0 = inlined_call_operand.<no memory space> [shape: s32[1], index: 0, kind: input, shape index: {}]
  %s1 = inlined_call_operand.vmem [shape: f32[2,8,16], index: 1, kind: input, shape index: {}]
  %s2 = inlined_call_operand.vmem [shape: f32[2,8,16], index: 2, kind: input, shape index: {}]
  %s3 = inlined_call_operand.vmem [shape: f32[2,8,1], index: 3, kind: input, shape index: {}]
  %s4 = inlined_call_operand.vmem [shape: f32[2,8,1], index: 4, kind: input, shape index: {}]
  %s5 = inlined_call_operand.vmem [shape: f32[2,1,8], index: 5, kind: input, shape index: {}]
  %s6 = inlined_call_operand.vmem [shape: bf16[16,768], index: 6, kind: input, shape index: {}]
  %s7 = inlined_call_operand.vmem [shape: f32[1,384], index: 7, kind: input, shape index: {}]
  %s8 = inlined_call_operand.vmem [shape: f32[768,60], index: 8, kind: input, shape index: {}]
  %s9 = inlined_call_operand.vmem [shape: f32[1,60], index: 9, kind: input, shape index: {}]
  %s10 = inlined_call_operand.hbm [shape: f32[2,60], index: 10, kind: output, shape index: {}]
  %s11 = sld [smem:[#allocation0]]
  $region46: #{seq2seq_difference.1} parent=0
    _
  %s13 = ssub.s32 1, %s11
  %s14 = scalar_select 0, %s13, %s11
  %15 = sst [smem:[#allocation3]] %s0
  $region1: #{seq2seq_difference.1} parent=0
    #allocation4 [shape = 'u8[1024]{0}', space=vmem, size = 0x400, scoped, tag = 'output window, operand 0, single buffered']
    #allocation5 [shape = 's32[1]{0}', space=sflag, size = 0x4, scoped, tag = 'scoped memory for seq2seq_difference.1']
    %16 = vsyncpa [#allocation5], 0
    // Predicated region
    $region2: #{seq2seq_difference.1} parent=1 // pred_check
      _
    $region3: #{seq2seq_difference.1} parent=1 // pred_check_branch
      %18 = sbr.rel (0) target = $region5
    $region4: #{seq2seq_difference.1} parent=1 // pred_region
      _
    $region5: #{seq2seq_difference.1} parent=1 // pred_fallthru
      _
    // Predicated region
    $region6: #{seq2seq_difference.1} parent=1 // pred_check
      _
    $region7: #{seq2seq_difference.1} parent=1 // pred_check_branch
      %20 = sbr.rel (0) target = $region9
    $region8: #{seq2seq_difference.1} parent=1 // pred_region
      _
    $region9: #{seq2seq_difference.1} parent=1 // pred_fallthru
      _
    // Predicated region
    $region10: #{seq2seq_difference.1} parent=1 // pred_check
      _
    $region11: #{seq2seq_difference.1} parent=1 // pred_check_branch
      %22 = sbr.rel (0) target = $region13
    $region12: #{seq2seq_difference.1} parent=1 // pred_region
      _
    $region13: #{seq2seq_difference.1} parent=1 // pred_fallthru
      _
    // Predicated region
    $region14: #{seq2seq_difference.1} parent=1 // pred_check
      _
    $region15: #{seq2seq_difference.1} parent=1 // pred_check_branch
      %24 = sbr.rel (0) target = $region17
    $region16: #{seq2seq_difference.1} parent=1 // pred_region
      _
    $region17: #{seq2seq_difference.1} parent=1 // pred_fallthru
      _
    // Predicated region
    $region18: #{seq2seq_difference.1} parent=1 // pred_check
      _
    $region19: #{seq2seq_difference.1} parent=1 // pred_check_branch
      %26 = sbr.rel (0) target = $region21
    $region20: #{seq2seq_difference.1} parent=1 // pred_region
      _
    $region21: #{seq2seq_difference.1} parent=1 // pred_fallthru
      _
    // Predicated region
    $region22: #{seq2seq_difference.1} parent=1 // pred_check
      _
    $region23: #{seq2seq_difference.1} parent=1 // pred_check_branch
      %28 = sbr.rel (0) target = $region25
    $region24: #{seq2seq_difference.1} parent=1 // pred_region
      _
    $region25: #{seq2seq_difference.1} parent=1 // pred_fallthru
      _
    // Predicated region
    $region26: #{seq2seq_difference.1} parent=1 // pred_check
      _
    $region27: #{seq2seq_difference.1} parent=1 // pred_check_branch
      %30 = sbr.rel (0) target = $region29
    $region28: #{seq2seq_difference.1} parent=1 // pred_region
      _
    $region29: #{seq2seq_difference.1} parent=1 // pred_fallthru
      _
    // Predicated region
    $region30: #{seq2seq_difference.1} parent=1 // pred_check
      _
    $region31: #{seq2seq_difference.1} parent=1 // pred_check_branch
      %32 = sbr.rel (0) target = $region33
    $region32: #{seq2seq_difference.1} parent=1 // pred_region
      _
    $region33: #{seq2seq_difference.1} parent=1 // pred_fallthru
      _
    // Predicated region
    $region34: #{seq2seq_difference.1} parent=1 // pred_check
      _
    $region35: #{seq2seq_difference.1} parent=1 // pred_check_branch
      %34 = sbr.rel (0) target = $region37
    $region36: #{seq2seq_difference.1} parent=1 // pred_region
      _
    $region37: #{seq2seq_difference.1} parent=1 // pred_fallthru
      _
    %v36 = vld [vmem:[%s1] sm:$0xff]
    %v37 = vld [vmem:[%s1 + $0x8] sm:$0xff]
    %v38 = vld [vmem:[%s2] sm:$0xff]
    %v39 = vld [vmem:[%s2 + $0x8] sm:$0xff]
    %v40 = vld [vmem:[%s3] sm:$0xff]
    %v41 = vld [vmem:[%s3 + $0x8] sm:$0xff]
    %v42 = vld [vmem:[%s4] sm:$0xff]
    %v43 = vld [vmem:[%s4 + $0x8] sm:$0xff]
    %v44 = vld [vmem:[%s5] sm:$0x1]
    %v45 = vld [vmem:[%s5 + $0x1] sm:$0x1]
    %vm46 = vcmask 7168
    %v47 = vsel %vm46, %v40, 0.0
    %v48 = vrot.slane %v47, 4
    %v49 = vadd.f32 %v47, %v48
    %v50 = vrot.slane %v49, 2
    %v51 = vadd.f32 %v49, %v50
    %v52 = vrot.slane %v51, 1
    %v53 = vadd.f32 %v51, %v52
    %v54 = vsel %vm46, %v41, 0.0
    %v55 = vrot.slane %v54, 4
    %v56 = vadd.f32 %v54, %v55
    %v57 = vrot.slane %v56, 2
    %v58 = vadd.f32 %v56, %v57
    %v59 = vrot.slane %v58, 1
    %v60 = vadd.f32 %v58, %v59
    %v61 = vsel %vm46, %v42, 0.0
    %v62 = vrot.slane %v61, 4
    %v63 = vadd.f32 %v61, %v62
    %v64 = vrot.slane %v63, 2
    %v65 = vadd.f32 %v63, %v64
    %v66 = vrot.slane %v65, 1
    %v67 = vadd.f32 %v65, %v66
    %v68 = vsel %vm46, %v43, 0.0
    %v69 = vrot.slane %v68, 4
    %v70 = vadd.f32 %v68, %v69
    %v71 = vrot.slane %v70, 2
    %v72 = vadd.f32 %v70, %v71
    %v73 = vrot.slane %v72, 1
    %v74 = vadd.f32 %v72, %v73
    %v75 = vpack.c.bf16 %v36, %v36
    %v76 = vpack.c.bf16 %v37, %v37
    %v77 = vpack.c.bf16 %v38, %v38
    %v78 = vpack.c.bf16 %v39, %v39
    %vm79 = vcmask 130048
    %v81 = vsel %vm79, %v75, 0
    %v84 = vsel %vm79, %v77, 0
    %86 = vmatprep.subr.bf16.mxu0 0
    %87 = vmatpush1.bf16.xpose.msra.mxu0 %v84
    %88 = vmatprep.subr.bf16.mxu0 0
    %89 = vmatpush1.bf16.xpose.msra.mxu0 0
    %90 = vmatprep.subr.bf16.mxu0 0
    %91 = vmatpush1.bf16.xpose.msra.mxu0 0
    %92 = vmatprep.subr.bf16.mxu0 0
    %93 = vmatpush1.bf16.xpose.msra.mxu0 0
    %94 = vmatprep.subr.bf16.mxu0 0
    %95 = vmatpush1.bf16.xpose.msra.mxu0 0
    %96 = vmatprep.subr.bf16.mxu0 0
    %97 = vmatpush1.bf16.xpose.msra.mxu0 0
    %98 = vmatprep.subr.bf16.mxu0 0
    %99 = vmatpush1.bf16.xpose.msra.mxu0 0
    %100 = vmatprep.subr.bf16.mxu0 0
    %101 = vmatpush1.bf16.xpose.msra.mxu0 0
    %102 = vmatprep.subr.bf16.mxu0 0
    %103 = vmatpush1.bf16.xpose.msra.mxu0 0
    %104 = vmatprep.subr.bf16.mxu0 0
    %105 = vmatpush1.bf16.xpose.msra.mxu0 0
    %106 = vmatprep.subr.bf16.mxu0 0
    %107 = vmatpush1.bf16.xpose.msra.mxu0 0
    %108 = vmatprep.subr.bf16.mxu0 0
    %109 = vmatpush1.bf16.xpose.msra.mxu0 0
    %110 = vmatprep.subr.bf16.mxu0 0
    %111 = vmatpush1.bf16.xpose.msra.mxu0 0
    %112 = vmatprep.subr.bf16.mxu0 0
    %113 = vmatpush1.bf16.xpose.msra.mxu0 0
    %114 = vmatprep.subr.bf16.mxu0 0
    %115 = vmatpush1.bf16.xpose.msra.mxu0 0
    %116 = vmatprep.subr.bf16.mxu0 0
    %117 = vmatpush1.bf16.xpose.msra.mxu0 0
    %118 = vmatprep.mubr.bf16.mxu0 0
    %119 = vmatmul.mubr.bf16.gmra.mrb[0].mxu0 %v81
    %v120 = vpop.f32.mrb[0].mxu0
    %v121 = vadd.f32 0.0, %v120
    %v122 = vpop.f32.mrb[0].mxu0
    %v123 = vpop.f32.mrb[0].mxu0
    %v124 = vpop.f32.mrb[0].mxu0
    %125 = vdwg.mxu0
    %v127 = vsel %vm79, %v76, 0
    %v130 = vsel %vm79, %v78, 0
    %132 = vmatprep.subr.bf16.mxu0 0
    %133 = vmatpush1.bf16.xpose.msra.mxu0 %v130
    %134 = vmatprep.subr.bf16.mxu0 0
    %135 = vmatpush1.bf16.xpose.msra.mxu0 0
    %136 = vmatprep.subr.bf16.mxu0 0
    %137 = vmatpush1.bf16.xpose.msra.mxu0 0
    %138 = vmatprep.subr.bf16.mxu0 0
    %139 = vmatpush1.bf16.xpose.msra.mxu0 0
    %140 = vmatprep.subr.bf16.mxu0 0
    %141 = vmatpush1.bf16.xpose.msra.mxu0 0
    %142 = vmatprep.subr.bf16.mxu0 0
    %143 = vmatpush1.bf16.xpose.msra.mxu0 0
    %144 = vmatprep.subr.bf16.mxu0 0
    %145 = vmatpush1.bf16.xpose.msra.mxu0 0
    %146 = vmatprep.subr.bf16.mxu0 0
    %147 = vmatpush1.bf16.xpose.msra.mxu0 0
    %148 = vmatprep.subr.bf16.mxu0 0
    %149 = vmatpush1.bf16.xpose.msra.mxu0 0
    %150 = vmatprep.subr.bf16.mxu0 0
    %151 = vmatpush1.bf16.xpose.msra.mxu0 0
    %152 = vmatprep.subr.bf16.mxu0 0
    %153 = vmatpush1.bf16.xpose.msra.mxu0 0
    %154 = vmatprep.subr.bf16.mxu0 0
    %155 = vmatpush1.bf16.xpose.msra.mxu0 0
    %156 = vmatprep.subr.bf16.mxu0 0
    %157 = vmatpush1.bf16.xpose.msra.mxu0 0
    %158 = vmatprep.subr.bf16.mxu0 0
    %159 = vmatpush1.bf16.xpose.msra.mxu0 0
    %160 = vmatprep.subr.bf16.mxu0 0
    %161 = vmatpush1.bf16.xpose.msra.mxu0 0
    %162 = vmatprep.subr.bf16.mxu0 0
    %163 = vmatpush1.bf16.xpose.msra.mxu0 0
    %164 = vmatprep.mubr.bf16.mxu0 0
    %165 = vmatmul.mubr.bf16.gmra.mrb[0].mxu0 %v127
    %v166 = vpop.f32.mrb[0].mxu0
    %v167 = vadd.f32 0.0, %v166
    %v168 = vpop.f32.mrb[0].mxu0
    %v169 = vpop.f32.mrb[0].mxu0
    %v170 = vpop.f32.mrb[0].mxu0
    %171 = vdwg.mxu0
    %173 = vset.pattern.permute.xlu0 0
    %174 = vperm.xlu0 %173, %v40
    %v175 = vpop.permute.xlu0 %174
    %178 = vset.pattern.permute.xlu0 0
    %179 = vperm.xlu0 %178, %v41
    %v180 = vpop.permute.xlu0 %179
    %v182 = vmul.f32 %v121, %v175
    %v183 = vmul.f32 %v167, %v180
    %v186 = vlaneseq
    %v187 = vshrl.u32 %v186, 7
    %v188 = vsub.s32 0, %v187
    %v189 = vrot.slane %v44, %v188
    %v190 = vlaneseq
    %v191 = vshrl.u32 %v190, 7
    %v192 = vsub.s32 0, %v191
    %v193 = vrot.slane %v45, %v192
    %v196 = vmul.f32 %v182, %v189
    %v197 = vmul.f32 %v183, %v193
    %v198 = vsub.f32 1.0, %v40
    %v199 = vsub.f32 1.0, %v41
    %v200 = vmul.f32 %v198, 10.0
    %v201 = vmul.f32 %v199, 10.0
    %203 = vset.pattern.permute.xlu0 0
    %204 = vperm.xlu0 %203, %v200
    %v205 = vpop.permute.xlu0 %204
    %208 = vset.pattern.permute.xlu0 0
    %209 = vperm.xlu0 %208, %v201
    %v210 = vpop.permute.xlu0 %209
    %v212 = vsub.f32 %v196, %v205
    %v213 = vsub.f32 %v197, %v210
    %vm214 = vcmask 64512
    %v215 = vsel %vm214, %v212, -inf
    %v216 = vrot.slane %v215, 4
    %v217 = vmax.f32 %v215, %v216
    %v218 = vrot.slane %v217, 2
    %v219 = vmax.f32 %v217, %v218
    %v220 = vrot.slane %v219, 1
    %v221 = vmax.f32 %v219, %v220
    %v222 = vsel %vm214, %v213, -inf
    %v223 = vrot.slane %v222, 4
    %v224 = vmax.f32 %v222, %v223
    %v225 = vrot.slane %v224, 2
    %v226 = vmax.f32 %v224, %v225
    %v227 = vrot.slane %v226, 1
    %v228 = vmax.f32 %v226, %v227
    %v229 = vsub.f32 %v212, %v221
    %v230 = vsub.f32 %v213, %v228
    %v231 = vmul.f32 %v229, 1.442695
    %v232 = vpow.pop %v231
    %v233 = vmul.f32 %v230, 1.442695
    %v234 = vpow.pop %v233
    %v235 = vsel %vm214, %v232, 0.0
    %v236 = vrot.slane %v235, 4
    %v237 = vadd.f32 %v235, %v236
    %v238 = vrot.slane %v237, 2
    %v239 = vadd.f32 %v237, %v238
    %v240 = vrot.slane %v239, 1
    %v241 = vadd.f32 %v239, %v240
    %v242 = vsel %vm214, %v234, 0.0
    %v243 = vrot.slane %v242, 4
    %v244 = vadd.f32 %v242, %v243
    %v245 = vrot.slane %v244, 2
    %v246 = vadd.f32 %v244, %v245
    %v247 = vrot.slane %v246, 1
    %v248 = vadd.f32 %v246, %v247
    %v249 = vrcp.pop %v241
    %v250 = vrcp.pop %v248
    %v251 = vmul.f32 %v232, %v249
    %v252 = vmul.f32 %v234, %v250
    %v253 = vmul.f32 %v251, %v175
    %v254 = vmul.f32 %v252, %v180
    %v255 = vsel %vm214, %v253, 0.0
    %v256 = vrot.slane %v255, 4
    %v257 = vadd.f32 %v255, %v256
    %v258 = vrot.slane %v257, 2
    %v259 = vadd.f32 %v257, %v258
    %v260 = vrot.slane %v259, 1
    %v261 = vadd.f32 %v259, %v260
    %v262 = vsel %vm214, %v254, 0.0
    %v263 = vrot.slane %v262, 4
    %v264 = vadd.f32 %v262, %v263
    %v265 = vrot.slane %v264, 2
    %v266 = vadd.f32 %v264, %v265
    %v267 = vrot.slane %v266, 1
    %v268 = vadd.f32 %v266, %v267
    %v269 = vadd.f32 %v261, 1e-13
    %v270 = vadd.f32 %v268, 1e-13
    %v271 = vrcp.pop %v269
    %v272 = vrcp.pop %v270
    %v273 = vmul.f32 %v253, %v271
    %v274 = vmul.f32 %v254, %v272
    %v275 = vsub.f32 1.0, %v44
    %v276 = vsub.f32 1.0, %v45
    %v277 = vmul.f32 %v275, 10.0
    %v278 = vmul.f32 %v276, 10.0
    %v281 = vlaneseq
    %v282 = vshrl.u32 %v281, 7
    %v283 = vsub.s32 0, %v282
    %v284 = vrot.slane %v277, %v283
    %v285 = vlaneseq
    %v286 = vshrl.u32 %v285, 7
    %v287 = vsub.s32 0, %v286
    %v288 = vrot.slane %v278, %v287
    %v291 = vsub.f32 %v196, %v284
    %v292 = vsub.f32 %v197, %v288
    %v293 = vsel %vm214, %v291, -inf
    %294 = vmax.xlane.f32.xlu0 %v293
    %v295 = vpop.xlane.xlu0 %294
    %v296 = vsel %vm214, %v292, -inf
    %297 = vmax.xlane.f32.xlu0 %v296
    %v298 = vpop.xlane.xlu0 %297
    %v299 = vsub.f32 %v291, %v295
    %v300 = vsub.f32 %v292, %v298
    %v301 = vmul.f32 %v299, 1.442695
    %v302 = vpow.pop %v301
    %v303 = vmul.f32 %v300, 1.442695
    %v304 = vpow.pop %v303
    %v305 = vsel %vm214, %v302, 0.0
    %306 = vadd.xlane.f32.xlu0 %v305
    %v307 = vpop.xlane.xlu0 %306
    %v308 = vsel %vm214, %v304, 0.0
    %309 = vadd.xlane.f32.xlu0 %v308
    %v310 = vpop.xlane.xlu0 %309
    %v311 = vrcp.pop %v307
    %v312 = vrcp.pop %v310
    %v313 = vmul.f32 %v302, %v311
    %v314 = vmul.f32 %v304, %v312
    %v315 = vmul.f32 %v313, %v189
    %v316 = vmul.f32 %v314, %v193
    %v317 = vsel %vm214, %v315, 0.0
    %318 = vadd.xlane.f32.xlu0 %v317
    %v319 = vpop.xlane.xlu0 %318
    %v320 = vsel %vm214, %v316, 0.0
    %321 = vadd.xlane.f32.xlu0 %v320
    %v322 = vpop.xlane.xlu0 %321
    %v323 = vadd.f32 %v319, 1e-13
    %v324 = vadd.f32 %v322, 1e-13
    %v325 = vrcp.pop %v323
    %v326 = vrcp.pop %v324
    %v327 = vmul.f32 %v315, %v325
    %v328 = vmul.f32 %v316, %v326
    %v329 = vlaneseq
    %v330 = vand.u32 %v329, 127
    %v331 = vlaneseq
    %v332 = vshrl.u32 %v331, 7
    %v333 = vrcp.pop %v67
    %v334 = vrcp.pop %v74
    %v335 = vsel %vm214, %v327, 0.0
    %336 = vadd.xlane.f32.xlu0 %v335
    %v337 = vpop.xlane.xlu0 %336
    %v338 = vsel %vm214, %v328, 0.0
    %339 = vadd.xlane.f32.xlu0 %v338
    %v340 = vpop.xlane.xlu0 %339
    %v341 = vmul.f32 %v337, %v333
    %v342 = vmul.f32 %v340, %v334
    %v343 = vmul.f32 %v327, %v327
    %v344 = vmul.f32 %v328, %v328
    %v345 = vsel %vm214, %v343, 0.0
    %346 = vadd.xlane.f32.xlu0 %v345
    %v347 = vpop.xlane.xlu0 %346
    %v348 = vsel %vm214, %v344, 0.0
    %349 = vadd.xlane.f32.xlu0 %v348
    %v350 = vpop.xlane.xlu0 %349
    %v351 = vmul.f32 %v347, %v333
    %v352 = vmul.f32 %v350, %v334
    %v353 = vmul.f32 %v341, %v341
    %v354 = vmul.f32 %v342, %v342
    %v355 = vsub.f32 %v351, %v353
    %v356 = vsub.f32 %v352, %v354
    %v357 = vmax.f32 %v341, 0.001
    %v358 = vmax.f32 %v342, 0.001
    %v359 = vrcp.pop %v357
    %v360 = vrcp.pop %v358
    %v361 = vmul.f32 %v355, %v359
    %v362 = vmul.f32 %v356, %v360
    %v363 = vsel %vm214, %v327, -inf
    %364 = vmax.xlane.f32.xlu0 %v363
    %v365 = vpop.xlane.xlu0 %364
    %v366 = vsel %vm214, %v328, -inf
    %367 = vmax.xlane.f32.xlu0 %v366
    %v368 = vpop.xlane.xlu0 %367
    %vm369 = vcmp.eq.f32.partialorder %v327, %v365
    %vm370 = vcmp.eq.f32.partialorder %v328, %v368
    %v371 = vsel %vm369, %v330, 8
    %v372 = vsel %vm370, %v330, 8
    %v373 = vsel %vm214, %v371, 2147483647
    %v374 = vand.u32 %v373, 65535
    %v375 = vshra.s32 %v373, 16
    %v376 = vcvt.s32.f32 %v374
    %v377 = vcvt.s32.f32 %v375
    %378 = vmin.xlane.f32.xlu0 %v377
    %v379 = vpop.xlane.xlu0 %378
    %vm380 = vcmp.eq.f32.partialorder %v377, %v379
    %v381 = vsel %vm380, %v376, inf
    %382 = vmin.xlane.f32.xlu0 %v381
    %v383 = vpop.xlane.xlu0 %382
    %v384 = vcvt.f32.s32 %v383
    %v385 = vcvt.f32.s32 %v379
    %v386 = vshll.u32 %v385, 16
    %v387 = vadd.s32 %v386, %v384
    %v388 = vsel %vm214, %v372, 2147483647
    %v389 = vand.u32 %v388, 65535
    %v390 = vshra.s32 %v388, 16
    %v391 = vcvt.s32.f32 %v389
    %v392 = vcvt.s32.f32 %v390
    %393 = vmin.xlane.f32.xlu0 %v392
    %v394 = vpop.xlane.xlu0 %393
    %vm395 = vcmp.eq.f32.partialorder %v392, %v394
    %v396 = vsel %vm395, %v391, inf
    %397 = vmin.xlane.f32.xlu0 %v396
    %v398 = vpop.xlane.xlu0 %397
    %v399 = vcvt.f32.s32 %v398
    %v400 = vcvt.f32.s32 %v394
    %v401 = vshll.u32 %v400, 16
    %v402 = vadd.s32 %v401, %v399
    %v403 = vcvt.f32.s32.to.zero.pseudo %v40
    %v404 = vcvt.f32.s32.to.zero.pseudo %v41
    %v405 = vmul.u32 %v387, %v403
    %v406 = vmul.u32 %v402, %v404
    %v407 = vmax.f32 %v365, 0.001
    %v408 = vmax.f32 %v368, 0.001
    %v409 = vrcp.pop %v407
    %v410 = vrcp.pop %v408
    %v411 = vmul.f32 %v365, %v409
    %v412 = vmul.f32 %v368, %v410
    %413 = vset.pattern.permute.xlu0 0
    %414 = vperm.xlu0 %413, %v405
    %v415 = vpop.permute.xlu0 %414
    %416 = vset.pattern.permute.xlu0 0
    %417 = vperm.xlu0 %416, %v406
    %v418 = vpop.permute.xlu0 %417
    %vm419 = vcmp.eq.s32.totalorder %v330, %v415
    %vm420 = vcmp.eq.s32.totalorder %v330, %v418
    %v421 = vsel %vm419, 1, 0
    %v422 = vsel %vm420, 1, 0
    %v423 = vcvt.s32.f32 %v421
    %v424 = vcvt.s32.f32 %v422
    %v425 = vmul.f32 %v423, %v411
    %v426 = vmul.f32 %v424, %v412
    %v428 = vsel %vm214, %v425, 0
    %430 = vmatprep.subr.mxu0 0.0
    %431 = vmatpush1.msra.mxu0 %v38
    %432 = vmatprep.subr.mxu0 0.0
    %433 = vmatpush1.msra.mxu0 0.0
    %434 = vmatprep.subr.mxu0 0.0
    %435 = vmatpush1.msra.mxu0 0.0
    %436 = vmatprep.subr.mxu0 0.0
    %437 = vmatpush1.msra.mxu0 0.0
    %438 = vmatprep.subr.mxu0 0.0
    %439 = vmatpush1.msra.mxu0 0.0
    %440 = vmatprep.subr.mxu0 0.0
    %441 = vmatpush1.msra.mxu0 0.0
    %442 = vmatprep.subr.mxu0 0.0
    %443 = vmatpush1.msra.mxu0 0.0
    %444 = vmatprep.subr.mxu0 0.0
    %445 = vmatpush1.msra.mxu0 0.0
    %446 = vmatprep.subr.mxu0 0.0
    %447 = vmatpush1.msra.mxu0 0.0
    %448 = vmatprep.subr.mxu0 0.0
    %449 = vmatpush1.msra.mxu0 0.0
    %450 = vmatprep.subr.mxu0 0.0
    %451 = vmatpush1.msra.mxu0 0.0
    %452 = vmatprep.subr.mxu0 0.0
    %453 = vmatpush1.msra.mxu0 0.0
    %454 = vmatprep.subr.mxu0 0.0
    %455 = vmatpush1.msra.mxu0 0.0
    %456 = vmatprep.subr.mxu0 0.0
    %457 = vmatpush1.msra.mxu0 0.0
    %458 = vmatprep.subr.mxu0 0.0
    %459 = vmatpush1.msra.mxu0 0.0
    %460 = vmatprep.subr.mxu0 0.0
    %461 = vmatpush1.msra.mxu0 0.0
    %462 = vmatprep.subr.mxu0 0.0
    %463 = vmatpush1.msra.mxu0 0.0
    %464 = vmatprep.subr.mxu0 0.0
    %465 = vmatpush1.msra.mxu0 0.0
    %466 = vmatprep.subr.mxu0 0.0
    %467 = vmatpush1.msra.mxu0 0.0
    %468 = vmatprep.subr.mxu0 0.0
    %469 = vmatpush1.msra.mxu0 0.0
    %470 = vmatprep.subr.mxu0 0.0
    %471 = vmatpush1.msra.mxu0 0.0
    %472 = vmatprep.subr.mxu0 0.0
    %473 = vmatpush1.msra.mxu0 0.0
    %474 = vmatprep.subr.mxu0 0.0
    %475 = vmatpush1.msra.mxu0 0.0
    %476 = vmatprep.subr.mxu0 0.0
    %477 = vmatpush1.msra.mxu0 0.0
    %478 = vmatprep.subr.mxu0 0.0
    %479 = vmatpush1.msra.mxu0 0.0
    %480 = vmatprep.subr.mxu0 0.0
    %481 = vmatpush1.msra.mxu0 0.0
    %482 = vmatprep.subr.mxu0 0.0
    %483 = vmatpush1.msra.mxu0 0.0
    %484 = vmatprep.subr.mxu0 0.0
    %485 = vmatpush1.msra.mxu0 0.0
    %486 = vmatprep.subr.mxu0 0.0
    %487 = vmatpush1.msra.mxu0 0.0
    %488 = vmatprep.subr.mxu0 0.0
    %489 = vmatpush1.msra.mxu0 0.0
    %490 = vmatprep.subr.mxu0 0.0
    %491 = vmatpush1.msra.mxu0 0.0
    %492 = vmatprep.subr.mxu0 0.0
    %493 = vmatpush1.msra.mxu0 0.0
    %494 = vmatprep.mubr.f32.mxu0 0.0
    %495 = vmatmul.mubr.f32.gmra.mrb[0].mxu0 %v428
    %v496 = vpop.f32.mrb[0].mxu0
    %v497 = vadd.f32 0.0, %v496
    %v498 = vpop.f32.mrb[0].mxu0
    %499 = vdwg.mxu0
    %v501 = vsel %vm214, %v426, 0
    %503 = vmatprep.subr.mxu0 0.0
    %504 = vmatpush1.msra.mxu0 %v39
    %505 = vmatprep.subr.mxu0 0.0
    %506 = vmatpush1.msra.mxu0 0.0
    %507 = vmatprep.subr.mxu0 0.0
    %508 = vmatpush1.msra.mxu0 0.0
    %509 = vmatprep.subr.mxu0 0.0
    %510 = vmatpush1.msra.mxu0 0.0
    %511 = vmatprep.subr.mxu0 0.0
    %512 = vmatpush1.msra.mxu0 0.0
    %513 = vmatprep.subr.mxu0 0.0
    %514 = vmatpush1.msra.mxu0 0.0
    %515 = vmatprep.subr.mxu0 0.0
    %516 = vmatpush1.msra.mxu0 0.0
    %517 = vmatprep.subr.mxu0 0.0
    %518 = vmatpush1.msra.mxu0 0.0
    %519 = vmatprep.subr.mxu0 0.0
    %520 = vmatpush1.msra.mxu0 0.0
    %521 = vmatprep.subr.mxu0 0.0
    %522 = vmatpush1.msra.mxu0 0.0
    %523 = vmatprep.subr.mxu0 0.0
    %524 = vmatpush1.msra.mxu0 0.0
    %525 = vmatprep.subr.mxu0 0.0
    %526 = vmatpush1.msra.mxu0 0.0
    %527 = vmatprep.subr.mxu0 0.0
    %528 = vmatpush1.msra.mxu0 0.0
    %529 = vmatprep.subr.mxu0 0.0
    %530 = vmatpush1.msra.mxu0 0.0
    %531 = vmatprep.subr.mxu0 0.0
    %532 = vmatpush1.msra.mxu0 0.0
    %533 = vmatprep.subr.mxu0 0.0
    %534 = vmatpush1.msra.mxu0 0.0
    %535 = vmatprep.subr.mxu0 0.0
    %536 = vmatpush1.msra.mxu0 0.0
    %537 = vmatprep.subr.mxu0 0.0
    %538 = vmatpush1.msra.mxu0 0.0
    %539 = vmatprep.subr.mxu0 0.0
    %540 = vmatpush1.msra.mxu0 0.0
    %541 = vmatprep.subr.mxu0 0.0
    %542 = vmatpush1.msra.mxu0 0.0
    %543 = vmatprep.subr.mxu0 0.0
    %544 = vmatpush1.msra.mxu0 0.0
    %545 = vmatprep.subr.mxu0 0.0
    %546 = vmatpush1.msra.mxu0 0.0
    %547 = vmatprep.subr.mxu0 0.0
    %548 = vmatpush1.msra.mxu0 0.0
    %549 = vmatprep.subr.mxu0 0.0
    %550 = vmatpush1.msra.mxu0 0.0
    %551 = vmatprep.subr.mxu0 0.0
    %552 = vmatpush1.msra.mxu0 0.0
    %553 = vmatprep.subr.mxu0 0.0
    %554 = vmatpush1.msra.mxu0 0.0
    %555 = vmatprep.subr.mxu0 0.0
    %556 = vmatpush1.msra.mxu0 0.0
    %557 = vmatprep.subr.mxu0 0.0
    %558 = vmatpush1.msra.mxu0 0.0
    %559 = vmatprep.subr.mxu0 0.0
    %560 = vmatpush1.msra.mxu0 0.0
    %561 = vmatprep.subr.mxu0 0.0
    %562 = vmatpush1.msra.mxu0 0.0
    %563 = vmatprep.subr.mxu0 0.0
    %564 = vmatpush1.msra.mxu0 0.0
    %565 = vmatprep.subr.mxu0 0.0
    %566 = vmatpush1.msra.mxu0 0.0
    %567 = vmatprep.mubr.f32.mxu0 0.0
    %568 = vmatmul.mubr.f32.gmra.mrb[0].mxu0 %v501
    %v569 = vpop.f32.mrb[0].mxu0
    %v570 = vadd.f32 0.0, %v569
    %v571 = vpop.f32.mrb[0].mxu0
    %572 = vdwg.mxu0
    %v573 = vsub.f32 %v36, %v497
    %v574 = vsub.f32 %v37, %v570
    %v575 = vand.u32 2147483647, %v573
    %v576 = vand.u32 2147483647, %v574
    %578 = vset.pattern.permute.xlu0 0
    %579 = vperm.xlu0 %578, %v361
    %v580 = vpop.permute.xlu0 %579
    %583 = vset.pattern.permute.xlu0 0
    %584 = vperm.xlu0 %583, %v362
    %v585 = vpop.permute.xlu0 %584
    %v587 = vmul.f32 %v580, %v575
    %v588 = vmul.f32 %v585, %v576
    %v589 = vmul.f32 %v587, %v175
    %v590 = vmul.f32 %v588, %v180
    %v591 = vrcp.pop %v53
    %v592 = vrcp.pop %v60
    %v593 = vsel %vm214, %v273, 0.0
    %v594 = vrot.slane %v593, 4
    %v595 = vadd.f32 %v593, %v594
    %v596 = vrot.slane %v595, 2
    %v597 = vadd.f32 %v595, %v596
    %v598 = vrot.slane %v597, 1
    %v599 = vadd.f32 %v597, %v598
    %v600 = vsel %vm214, %v274, 0.0
    %v601 = vrot.slane %v600, 4
    %v602 = vadd.f32 %v600, %v601
    %v603 = vrot.slane %v602, 2
    %v604 = vadd.f32 %v602, %v603
    %v605 = vrot.slane %v604, 1
    %v606 = vadd.f32 %v604, %v605
    %608 = vset.pattern.permute.xlu0 0
    %609 = vperm.xlu0 %608, %v591
    %v610 = vpop.permute.xlu0 %609
    %613 = vset.pattern.permute.xlu0 0
    %614 = vperm.xlu0 %613, %v592
    %v615 = vpop.permute.xlu0 %614
    %v617 = vmul.f32 %v599, %v610
    %v618 = vmul.f32 %v606, %v615
    %v619 = vmul.f32 %v273, %v273
    %v620 = vmul.f32 %v274, %v274
    %v621 = vsel %vm214, %v619, 0.0
    %v622 = vrot.slane %v621, 4
    %v623 = vadd.f32 %v621, %v622
    %v624 = vrot.slane %v623, 2
    %v625 = vadd.f32 %v623, %v624
    %v626 = vrot.slane %v625, 1
    %v627 = vadd.f32 %v625, %v626
    %v628 = vsel %vm214, %v620, 0.0
    %v629 = vrot.slane %v628, 4
    %v630 = vadd.f32 %v628, %v629
    %v631 = vrot.slane %v630, 2
    %v632 = vadd.f32 %v630, %v631
    %v633 = vrot.slane %v632, 1
    %v634 = vadd.f32 %v632, %v633
    %v635 = vmul.f32 %v627, %v610
    %v636 = vmul.f32 %v634, %v615
    %v637 = vmul.f32 %v617, %v617
    %v638 = vmul.f32 %v618, %v618
    %v639 = vsub.f32 %v635, %v637
    %v640 = vsub.f32 %v636, %v638
    %v641 = vmax.f32 %v617, 0.001
    %v642 = vmax.f32 %v618, 0.001
    %v643 = vrcp.pop %v641
    %v644 = vrcp.pop %v642
    %v645 = vmul.f32 %v639, %v643
    %v646 = vmul.f32 %v640, %v644
    %v647 = vsel %vm214, %v273, -inf
    %v648 = vrot.slane %v647, 4
    %v649 = vmax.f32 %v647, %v648
    %v650 = vrot.slane %v649, 2
    %v651 = vmax.f32 %v649, %v650
    %v652 = vrot.slane %v651, 1
    %v653 = vmax.f32 %v651, %v652
    %v654 = vsel %vm214, %v274, -inf
    %v655 = vrot.slane %v654, 4
    %v656 = vmax.f32 %v654, %v655
    %v657 = vrot.slane %v656, 2
    %v658 = vmax.f32 %v656, %v657
    %v659 = vrot.slane %v658, 1
    %v660 = vmax.f32 %v658, %v659
    %vm661 = vcmp.eq.f32.partialorder %v273, %v653
    %vm662 = vcmp.eq.f32.partialorder %v274, %v660
    %v663 = vsel %vm661, %v332, 8
    %v664 = vsel %vm662, %v332, 8
    %v665 = vsel %vm214, %v663, 2147483647
    %v666 = vrot.slane %v665, 4
    %vm667 = vcmp.lt.s32.totalorder %v665, %v666
    %v668 = vsel %vm667, %v665, %v666
    %v669 = vrot.slane %v668, 2
    %vm670 = vcmp.lt.s32.totalorder %v668, %v669
    %v671 = vsel %vm670, %v668, %v669
    %v672 = vrot.slane %v671, 1
    %vm673 = vcmp.lt.s32.totalorder %v671, %v672
    %v674 = vsel %vm673, %v671, %v672
    %v675 = vsel %vm214, %v664, 2147483647
    %v676 = vrot.slane %v675, 4
    %vm677 = vcmp.lt.s32.totalorder %v675, %v676
    %v678 = vsel %vm677, %v675, %v676
    %v679 = vrot.slane %v678, 2
    %vm680 = vcmp.lt.s32.totalorder %v678, %v679
    %v681 = vsel %vm680, %v678, %v679
    %v682 = vrot.slane %v681, 1
    %vm683 = vcmp.lt.s32.totalorder %v681, %v682
    %v684 = vsel %vm683, %v681, %v682
    %v685 = vcvt.f32.s32.to.zero.pseudo %v44
    %v686 = vcvt.f32.s32.to.zero.pseudo %v45
    %v687 = vmul.u32 %v674, %v685
    %v688 = vmul.u32 %v684, %v686
    %v689 = vmax.f32 %v653, 0.001
    %v690 = vmax.f32 %v660, 0.001
    %v691 = vrcp.pop %v689
    %v692 = vrcp.pop %v690
    %v693 = vmul.f32 %v653, %v691
    %v694 = vmul.f32 %v660, %v692
    %v695 = vlaneseq
    %v696 = vshrl.u32 %v695, 7
    %v697 = vsub.s32 0, %v696
    %v698 = vrot.slane %v687, %v697
    %v699 = vlaneseq
    %v700 = vshrl.u32 %v699, 7
    %v701 = vsub.s32 0, %v700
    %v702 = vrot.slane %v688, %v701
    %vm703 = vcmp.eq.s32.totalorder %v332, %v698
    %vm704 = vcmp.eq.s32.totalorder %v332, %v702
    %v705 = vsel %vm703, 1, 0
    %v706 = vsel %vm704, 1, 0
    %v707 = vcvt.s32.f32 %v705
    %v708 = vcvt.s32.f32 %v706
    %v709 = vmul.f32 %v707, %v693
    %v710 = vmul.f32 %v708, %v694
    %711 = vxpose.xlu0.b32.start [1/16] %v709, 128
    %712 = vxpose.xlu0.b32.cont [2/16] 0.0, 128
    %713 = vxpose.xlu0.b32.cont [3/16] 0.0, 128
    %714 = vxpose.xlu0.b32.cont [4/16] 0.0, 128
    %715 = vxpose.xlu0.b32.cont [5/16] 0.0, 128
    %716 = vxpose.xlu0.b32.cont [6/16] 0.0, 128
    %717 = vxpose.xlu0.b32.cont [7/16] 0.0, 128
    %718 = vxpose.xlu0.b32.cont [8/16] 0.0, 128
    %719 = vxpose.xlu0.b32.cont [9/16] 0.0, 128
    %720 = vxpose.xlu0.b32.cont [10/16] 0.0, 128
    %721 = vxpose.xlu0.b32.cont [11/16] 0.0, 128
    %722 = vxpose.xlu0.b32.cont [12/16] 0.0, 128
    %723 = vxpose.xlu0.b32.cont [13/16] 0.0, 128
    %724 = vxpose.xlu0.b32.cont [14/16] 0.0, 128
    %725 = vxpose.xlu0.b32.cont [15/16] 0.0, 128
    %726 = vxpose.xlu0.b32.end [16/16] 0.0, 128
    %v727 = vpop.trf.xlu0
    %v728 = vpop.trf.xlu0
    %v729 = vpop.trf.xlu0
    %v730 = vpop.trf.xlu0
    %v731 = vpop.trf.xlu0
    %v732 = vpop.trf.xlu0
    %v733 = vpop.trf.xlu0
    %v734 = vpop.trf.xlu0
    %v735 = vpop.trf.xlu0
    %v736 = vpop.trf.xlu0
    %v737 = vpop.trf.xlu0
    %v738 = vpop.trf.xlu0
    %v739 = vpop.trf.xlu0
    %v740 = vpop.trf.xlu0
    %v741 = vpop.trf.xlu0
    %v742 = vpop.trf.xlu0
    %v744 = vsel %vm214, %v727, 0
    %746 = vmatprep.subr.mxu0 0.0
    %747 = vmatpush1.msra.mxu0 %v36
    %748 = vmatprep.subr.mxu0 0.0
    %749 = vmatpush1.msra.mxu0 0.0
    %750 = vmatprep.subr.mxu0 0.0
    %751 = vmatpush1.msra.mxu0 0.0
    %752 = vmatprep.subr.mxu0 0.0
    %753 = vmatpush1.msra.mxu0 0.0
    %754 = vmatprep.subr.mxu0 0.0
    %755 = vmatpush1.msra.mxu0 0.0
    %756 = vmatprep.subr.mxu0 0.0
    %757 = vmatpush1.msra.mxu0 0.0
    %758 = vmatprep.subr.mxu0 0.0
    %759 = vmatpush1.msra.mxu0 0.0
    %760 = vmatprep.subr.mxu0 0.0
    %761 = vmatpush1.msra.mxu0 0.0
    %762 = vmatprep.subr.mxu0 0.0
    %763 = vmatpush1.msra.mxu0 0.0
    %764 = vmatprep.subr.mxu0 0.0
    %765 = vmatpush1.msra.mxu0 0.0
    %766 = vmatprep.subr.mxu0 0.0
    %767 = vmatpush1.msra.mxu0 0.0
    %768 = vmatprep.subr.mxu0 0.0
    %769 = vmatpush1.msra.mxu0 0.0
    %770 = vmatprep.subr.mxu0 0.0
    %771 = vmatpush1.msra.mxu0 0.0
    %772 = vmatprep.subr.mxu0 0.0
    %773 = vmatpush1.msra.mxu0 0.0
    %774 = vmatprep.subr.mxu0 0.0
    %775 = vmatpush1.msra.mxu0 0.0
    %776 = vmatprep.subr.mxu0 0.0
    %777 = vmatpush1.msra.mxu0 0.0
    %778 = vmatprep.subr.mxu0 0.0
    %779 = vmatpush1.msra.mxu0 0.0
    %780 = vmatprep.subr.mxu0 0.0
    %781 = vmatpush1.msra.mxu0 0.0
    %782 = vmatprep.subr.mxu0 0.0
    %783 = vmatpush1.msra.mxu0 0.0
    %784 = vmatprep.subr.mxu0 0.0
    %785 = vmatpush1.msra.mxu0 0.0
    %786 = vmatprep.subr.mxu0 0.0
    %787 = vmatpush1.msra.mxu0 0.0
    %788 = vmatprep.subr.mxu0 0.0
    %789 = vmatpush1.msra.mxu0 0.0
    %790 = vmatprep.subr.mxu0 0.0
    %791 = vmatpush1.msra.mxu0 0.0
    %792 = vmatprep.subr.mxu0 0.0
    %793 = vmatpush1.msra.mxu0 0.0
    %794 = vmatprep.subr.mxu0 0.0
    %795 = vmatpush1.msra.mxu0 0.0
    %796 = vmatprep.subr.mxu0 0.0
    %797 = vmatpush1.msra.mxu0 0.0
    %798 = vmatprep.subr.mxu0 0.0
    %799 = vmatpush1.msra.mxu0 0.0
    %800 = vmatprep.subr.mxu0 0.0
    %801 = vmatpush1.msra.mxu0 0.0
    %802 = vmatprep.subr.mxu0 0.0
    %803 = vmatpush1.msra.mxu0 0.0
    %804 = vmatprep.subr.mxu0 0.0
    %805 = vmatpush1.msra.mxu0 0.0
    %806 = vmatprep.subr.mxu0 0.0
    %807 = vmatpush1.msra.mxu0 0.0
    %808 = vmatprep.subr.mxu0 0.0
    %809 = vmatpush1.msra.mxu0 0.0
    %810 = vmatprep.mubr.f32.mxu0 0.0
    %811 = vmatmul.mubr.f32.gmra.mrb[0].mxu0 %v744
    %v812 = vpop.f32.mrb[0].mxu0
    %v813 = vadd.f32 0.0, %v812
    %v814 = vpop.f32.mrb[0].mxu0
    %815 = vdwg.mxu0
    %816 = vxpose.xlu0.b32.start [1/16] %v710, 128
    %817 = vxpose.xlu0.b32.cont [2/16] 0.0, 128
    %818 = vxpose.xlu0.b32.cont [3/16] 0.0, 128
    %819 = vxpose.xlu0.b32.cont [4/16] 0.0, 128
    %820 = vxpose.xlu0.b32.cont [5/16] 0.0, 128
    %821 = vxpose.xlu0.b32.cont [6/16] 0.0, 128
    %822 = vxpose.xlu0.b32.cont [7/16] 0.0, 128
    %823 = vxpose.xlu0.b32.cont [8/16] 0.0, 128
    %824 = vxpose.xlu0.b32.cont [9/16] 0.0, 128
    %825 = vxpose.xlu0.b32.cont [10/16] 0.0, 128
    %826 = vxpose.xlu0.b32.cont [11/16] 0.0, 128
    %827 = vxpose.xlu0.b32.cont [12/16] 0.0, 128
    %828 = vxpose.xlu0.b32.cont [13/16] 0.0, 128
    %829 = vxpose.xlu0.b32.cont [14/16] 0.0, 128
    %830 = vxpose.xlu0.b32.cont [15/16] 0.0, 128
    %831 = vxpose.xlu0.b32.end [16/16] 0.0, 128
    %v832 = vpop.trf.xlu0
    %v833 = vpop.trf.xlu0
    %v834 = vpop.trf.xlu0
    %v835 = vpop.trf.xlu0
    %v836 = vpop.trf.xlu0
    %v837 = vpop.trf.xlu0
    %v838 = vpop.trf.xlu0
    %v839 = vpop.trf.xlu0
    %v840 = vpop.trf.xlu0
    %v841 = vpop.trf.xlu0
    %v842 = vpop.trf.xlu0
    %v843 = vpop.trf.xlu0
    %v844 = vpop.trf.xlu0
    %v845 = vpop.trf.xlu0
    %v846 = vpop.trf.xlu0
    %v847 = vpop.trf.xlu0
    %v849 = vsel %vm214, %v832, 0
    %851 = vmatprep.subr.mxu0 0.0
    %852 = vmatpush1.msra.mxu0 %v37
    %853 = vmatprep.subr.mxu0 0.0
    %854 = vmatpush1.msra.mxu0 0.0
    %855 = vmatprep.subr.mxu0 0.0
    %856 = vmatpush1.msra.mxu0 0.0
    %857 = vmatprep.subr.mxu0 0.0
    %858 = vmatpush1.msra.mxu0 0.0
    %859 = vmatprep.subr.mxu0 0.0
    %860 = vmatpush1.msra.mxu0 0.0
    %861 = vmatprep.subr.mxu0 0.0
    %862 = vmatpush1.msra.mxu0 0.0
    %863 = vmatprep.subr.mxu0 0.0
    %864 = vmatpush1.msra.mxu0 0.0
    %865 = vmatprep.subr.mxu0 0.0
    %866 = vmatpush1.msra.mxu0 0.0
    %867 = vmatprep.subr.mxu0 0.0
    %868 = vmatpush1.msra.mxu0 0.0
    %869 = vmatprep.subr.mxu0 0.0
    %870 = vmatpush1.msra.mxu0 0.0
    %871 = vmatprep.subr.mxu0 0.0
    %872 = vmatpush1.msra.mxu0 0.0
    %873 = vmatprep.subr.mxu0 0.0
    %874 = vmatpush1.msra.mxu0 0.0
    %875 = vmatprep.subr.mxu0 0.0
    %876 = vmatpush1.msra.mxu0 0.0
    %877 = vmatprep.subr.mxu0 0.0
    %878 = vmatpush1.msra.mxu0 0.0
    %879 = vmatprep.subr.mxu0 0.0
    %880 = vmatpush1.msra.mxu0 0.0
    %881 = vmatprep.subr.mxu0 0.0
    %882 = vmatpush1.msra.mxu0 0.0
    %883 = vmatprep.subr.mxu0 0.0
    %884 = vmatpush1.msra.mxu0 0.0
    %885 = vmatprep.subr.mxu0 0.0
    %886 = vmatpush1.msra.mxu0 0.0
    %887 = vmatprep.subr.mxu0 0.0
    %888 = vmatpush1.msra.mxu0 0.0
    %889 = vmatprep.subr.mxu0 0.0
    %890 = vmatpush1.msra.mxu0 0.0
    %891 = vmatprep.subr.mxu0 0.0
    %892 = vmatpush1.msra.mxu0 0.0
    %893 = vmatprep.subr.mxu0 0.0
    %894 = vmatpush1.msra.mxu0 0.0
    %895 = vmatprep.subr.mxu0 0.0
    %896 = vmatpush1.msra.mxu0 0.0
    %897 = vmatprep.subr.mxu0 0.0
    %898 = vmatpush1.msra.mxu0 0.0
    %899 = vmatprep.subr.mxu0 0.0
    %900 = vmatpush1.msra.mxu0 0.0
    %901 = vmatprep.subr.mxu0 0.0
    %902 = vmatpush1.msra.mxu0 0.0
    %903 = vmatprep.subr.mxu0 0.0
    %904 = vmatpush1.msra.mxu0 0.0
    %905 = vmatprep.subr.mxu0 0.0
    %906 = vmatpush1.msra.mxu0 0.0
    %907 = vmatprep.subr.mxu0 0.0
    %908 = vmatpush1.msra.mxu0 0.0
    %909 = vmatprep.subr.mxu0 0.0
    %910 = vmatpush1.msra.mxu0 0.0
    %911 = vmatprep.subr.mxu0 0.0
    %912 = vmatpush1.msra.mxu0 0.0
    %913 = vmatprep.subr.mxu0 0.0
    %914 = vmatpush1.msra.mxu0 0.0
    %915 = vmatprep.mubr.f32.mxu0 0.0
    %916 = vmatmul.mubr.f32.gmra.mrb[0].mxu0 %v849
    %v917 = vpop.f32.mrb[0].mxu0
    %v918 = vadd.f32 0.0, %v917
    %v919 = vpop.f32.mrb[0].mxu0
    %920 = vdwg.mxu0
    %vm921 = vcmp.eq.s32.totalorder %v332, %v330
    %v922 = vsel %vm921, 1, 0
    %v923 = vcvt.s32.f32 %v922
    %v924 = vmul.f32 %v923, %v645
    %v925 = vmul.f32 %v923, %v646
    %v926 = vsel %vm214, %v924, 0.0
    %927 = vadd.xlane.f32.xlu0 %v926
    %v928 = vpop.xlane.xlu0 %927
    %v929 = vsel %vm214, %v925, 0.0
    %930 = vadd.xlane.f32.xlu0 %v929
    %v931 = vpop.xlane.xlu0 %930
    %v932 = vsub.f32 %v38, %v813
    %v933 = vsub.f32 %v39, %v918
    %v934 = vand.u32 2147483647, %v932
    %v935 = vand.u32 2147483647, %v933
    %v936 = vmul.f32 %v928, %v934
    %v937 = vmul.f32 %v931, %v935
    %939 = vset.pattern.permute.xlu0 0
    %940 = vperm.xlu0 %939, %v42
    %v941 = vpop.permute.xlu0 %940
    %944 = vset.pattern.permute.xlu0 0
    %945 = vperm.xlu0 %944, %v43
    %v946 = vpop.permute.xlu0 %945
    %v948 = vmul.f32 %v936, %v941
    %v949 = vmul.f32 %v937, %v946
    %v950 = vld [vmem:[%s6] sm:$0xff]
    %v951 = vld [vmem:[%s6 + $0x8] sm:$0xff]
    %v952 = vld [vmem:[%s6 + $0x10] sm:$0xff]
    %v953 = vld [vmem:[%s6 + $0x18] sm:$0xff]
    %v954 = vld [vmem:[%s6 + $0x20] sm:$0xff]
    %v955 = vld [vmem:[%s6 + $0x28] sm:$0xff]
    %v956 = vld [vmem:[%s7] sm:$0x7]
    %v957 = vpack.c.bf16 %v590, %v589
    %v964 = vunpack.c.l.b16 %v950
    %v965 = vunpack.c.h.b16 %v950
    %v966 = vunpack.c.l.b16 %v951
    %v967 = vunpack.c.h.b16 %v951
    %v968 = vunpack.c.l.b16 %v952
    %v969 = vunpack.c.h.b16 %v952
    %v970 = vunpack.c.l.b16 %v953
    %v971 = vunpack.c.h.b16 %v953
    %v972 = vunpack.c.l.b16 %v954
    %v973 = vunpack.c.h.b16 %v954
    %v974 = vunpack.c.l.b16 %v955
    %v975 = vunpack.c.h.b16 %v955
    %v976 = vpack.c.b16 %v970, %v964
    %v977 = vpack.c.b16 %v971, %v965
    %v978 = vpack.c.b16 %v972, %v966
    %v979 = vpack.c.b16 %v973, %v967
    %v980 = vpack.c.b16 %v974, %v968
    %v981 = vpack.c.b16 %v975, %v969
    %v989 = vsel %vm79, %v957, 0
    %991 = vmatprep.subr.bf16.mxu0 %v977
    %992 = vmatpush1.bf16.msra.mxu0 %v976
    %993 = vmatprep.subr.bf16.mxu0 0
    %994 = vmatpush1.bf16.msra.mxu0 0
    %995 = vmatprep.subr.bf16.mxu0 0
    %996 = vmatpush1.bf16.msra.mxu0 0
    %997 = vmatprep.subr.bf16.mxu0 0
    %998 = vmatpush1.bf16.msra.mxu0 0
    %999 = vmatprep.subr.bf16.mxu0 0
    %1000 = vmatpush1.bf16.msra.mxu0 0
    %1001 = vmatprep.subr.bf16.mxu0 0
    %1002 = vmatpush1.bf16.msra.mxu0 0
    %1003 = vmatprep.subr.bf16.mxu0 0
    %1004 = vmatpush1.bf16.msra.mxu0 0
    %1005 = vmatprep.subr.bf16.mxu0 0
    %1006 = vmatpush1.bf16.msra.mxu0 0
    %1007 = vmatprep.subr.bf16.mxu0 0
    %1008 = vmatpush1.bf16.msra.mxu0 0
    %1009 = vmatprep.subr.bf16.mxu0 0
    %1010 = vmatpush1.bf16.msra.mxu0 0
    %1011 = vmatprep.subr.bf16.mxu0 0
    %1012 = vmatpush1.bf16.msra.mxu0 0
    %1013 = vmatprep.subr.bf16.mxu0 0
    %1014 = vmatpush1.bf16.msra.mxu0 0
    %1015 = vmatprep.subr.bf16.mxu0 0
    %1016 = vmatpush1.bf16.msra.mxu0 0
    %1017 = vmatprep.subr.bf16.mxu0 0
    %1018 = vmatpush1.bf16.msra.mxu0 0
    %1019 = vmatprep.subr.bf16.mxu0 0
    %1020 = vmatpush1.bf16.msra.mxu0 0
    %1021 = vmatprep.subr.bf16.mxu0 0
    %1022 = vmatpush1.bf16.msra.mxu0 0
    %1023 = vmatprep.mubr.bf16.mxu0 0
    %1024 = vmatmul.mubr.bf16.gmra.mrb[0].mxu0 %v989
    %v1025 = vpop.f32.mrb[0].mxu0
    %v1026 = vadd.f32 0.0, %v1025
    %v1027 = vpop.f32.mrb[0].mxu0
    %v1028 = vadd.f32 0.0, %v1027
    %v1029 = vpop.f32.mrb[0].mxu0
    %v1030 = vadd.f32 0.0, %v1029
    %v1031 = vpop.f32.mrb[0].mxu0
    %v1032 = vadd.f32 0.0, %v1031
    %1033 = vdwg.mxu0
    %1034 = vmatprep.subr.bf16.mxu0 %v979
    %1035 = vmatpush1.bf16.msra.mxu0 %v978
    %1036 = vmatprep.subr.bf16.mxu0 0
    %1037 = vmatpush1.bf16.msra.mxu0 0
    %1038 = vmatprep.subr.bf16.mxu0 0
    %1039 = vmatpush1.bf16.msra.mxu0 0
    %1040 = vmatprep.subr.bf16.mxu0 0
    %1041 = vmatpush1.bf16.msra.mxu0 0
    %1042 = vmatprep.subr.bf16.mxu0 0
    %1043 = vmatpush1.bf16.msra.mxu0 0
    %1044 = vmatprep.subr.bf16.mxu0 0
    %1045 = vmatpush1.bf16.msra.mxu0 0
    %1046 = vmatprep.subr.bf16.mxu0 0
    %1047 = vmatpush1.bf16.msra.mxu0 0
    %1048 = vmatprep.subr.bf16.mxu0 0
    %1049 = vmatpush1.bf16.msra.mxu0 0
    %1050 = vmatprep.subr.bf16.mxu0 0
    %1051 = vmatpush1.bf16.msra.mxu0 0
    %1052 = vmatprep.subr.bf16.mxu0 0
    %1053 = vmatpush1.bf16.msra.mxu0 0
    %1054 = vmatprep.subr.bf16.mxu0 0
    %1055 = vmatpush1.bf16.msra.mxu0 0
    %1056 = vmatprep.subr.bf16.mxu0 0
    %1057 = vmatpush1.bf16.msra.mxu0 0
    %1058 = vmatprep.subr.bf16.mxu0 0
    %1059 = vmatpush1.bf16.msra.mxu0 0
    %1060 = vmatprep.subr.bf16.mxu0 0
    %1061 = vmatpush1.bf16.msra.mxu0 0
    %1062 = vmatprep.subr.bf16.mxu0 0
    %1063 = vmatpush1.bf16.msra.mxu0 0
    %1064 = vmatprep.subr.bf16.mxu0 0
    %1065 = vmatpush1.bf16.msra.mxu0 0
    %1066 = vmatprep.mubr.bf16.mxu0 0
    %1067 = vmatmul.mubr.bf16.gmra.mrb[0].mxu0 %v989
    %v1068 = vpop.f32.mrb[0].mxu0
    %v1069 = vadd.f32 0.0, %v1068
    %v1070 = vpop.f32.mrb[0].mxu0
    %v1071 = vadd.f32 0.0, %v1070
    %v1072 = vpop.f32.mrb[0].mxu0
    %v1073 = vadd.f32 0.0, %v1072
    %v1074 = vpop.f32.mrb[0].mxu0
    %v1075 = vadd.f32 0.0, %v1074
    %1076 = vdwg.mxu0
    %1077 = vmatprep.subr.bf16.mxu0 %v981
    %1078 = vmatpush1.bf16.msra.mxu0 %v980
    %1079 = vmatprep.subr.bf16.mxu0 0
    %1080 = vmatpush1.bf16.msra.mxu0 0
    %1081 = vmatprep.subr.bf16.mxu0 0
    %1082 = vmatpush1.bf16.msra.mxu0 0
    %1083 = vmatprep.subr.bf16.mxu0 0
    %1084 = vmatpush1.bf16.msra.mxu0 0
    %1085 = vmatprep.subr.bf16.mxu0 0
    %1086 = vmatpush1.bf16.msra.mxu0 0
    %1087 = vmatprep.subr.bf16.mxu0 0
    %1088 = vmatpush1.bf16.msra.mxu0 0
    %1089 = vmatprep.subr.bf16.mxu0 0
    %1090 = vmatpush1.bf16.msra.mxu0 0
    %1091 = vmatprep.subr.bf16.mxu0 0
    %1092 = vmatpush1.bf16.msra.mxu0 0
    %1093 = vmatprep.subr.bf16.mxu0 0
    %1094 = vmatpush1.bf16.msra.mxu0 0
    %1095 = vmatprep.subr.bf16.mxu0 0
    %1096 = vmatpush1.bf16.msra.mxu0 0
    %1097 = vmatprep.subr.bf16.mxu0 0
    %1098 = vmatpush1.bf16.msra.mxu0 0
    %1099 = vmatprep.subr.bf16.mxu0 0
    %1100 = vmatpush1.bf16.msra.mxu0 0
    %1101 = vmatprep.subr.bf16.mxu0 0
    %1102 = vmatpush1.bf16.msra.mxu0 0
    %1103 = vmatprep.subr.bf16.mxu0 0
    %1104 = vmatpush1.bf16.msra.mxu0 0
    %1105 = vmatprep.subr.bf16.mxu0 0
    %1106 = vmatpush1.bf16.msra.mxu0 0
    %1107 = vmatprep.subr.bf16.mxu0 0
    %1108 = vmatpush1.bf16.msra.mxu0 0
    %1109 = vmatprep.mubr.bf16.mxu0 0
    %1110 = vmatmul.mubr.bf16.gmra.mrb[0].mxu0 %v989
    %v1111 = vpop.f32.mrb[0].mxu0
    %v1112 = vadd.f32 0.0, %v1111
    %v1113 = vpop.f32.mrb[0].mxu0
    %v1114 = vadd.f32 0.0, %v1113
    %v1115 = vpop.f32.mrb[0].mxu0
    %v1116 = vadd.f32 0.0, %v1115
    %v1117 = vpop.f32.mrb[0].mxu0
    %v1118 = vadd.f32 0.0, %v1117
    %1119 = vdwg.mxu0
    %v1120 = vcvt.f32.s32.to.zero.pseudo %v53
    %v1121 = vcvt.f32.s32.to.zero.pseudo %v60
    %v1123 = vlaneseq
    %v1124 = vshrl.u32 %v1123, 7
    %v1125 = vsub.s32 0, %v1124
    %v1126 = vrot.slane %v956, %v1125
    %v1128 = vadd.f32 %v1026, %v1126
    %v1129 = vadd.f32 %v1030, %v1126
    %v1130 = vmax.f32 %v1128, 0.0
    %v1131 = vmax.f32 %v1129, 0.0
    %vm1132 = vcmp.lt.s32.totalorder %v332, %v1120
    %vm1133 = vcmp.lt.s32.totalorder %v332, %v1121
    %v1134 = vsel %vm1132, 1, 0
    %v1135 = vsel %vm1133, 1, 0
    %v1136 = vcvt.s32.f32 %v1134
    %v1137 = vcvt.s32.f32 %v1135
    %1139 = vset.pattern.permute.xlu0 0
    %1140 = vperm.xlu0 %1139, %v1136
    %v1141 = vpop.permute.xlu0 %1140
    %1144 = vset.pattern.permute.xlu0 0
    %1145 = vperm.xlu0 %1144, %v1137
    %v1146 = vpop.permute.xlu0 %1145
    %v1148 = vmul.f32 %v1130, %v1141
    %v1149 = vmul.f32 %v1131, %v1146
    %v1150 = vrot.slane %v1148, 4
    %v1151 = vmax.f32 %v1148, %v1150
    %v1152 = vrot.slane %v1151, 2
    %v1153 = vmax.f32 %v1151, %v1152
    %v1154 = vrot.slane %v1153, 1
    %v1155 = vmax.f32 %v1153, %v1154
    %v1156 = vrot.slane %v1149, 4
    %v1157 = vmax.f32 %v1149, %v1156
    %v1158 = vrot.slane %v1157, 2
    %v1159 = vmax.f32 %v1157, %v1158
    %v1160 = vrot.slane %v1159, 1
    %v1161 = vmax.f32 %v1159, %v1160
    %v1162 = vrot.slane %v1069, 1
    %v1163 = vrot.slane %v1073, 1
    %vm1164 = vcmp.lt.s32.totalorder %v332, 7
    %v1165 = vsel %vm1164, %v1162, %v1163
    %v1166 = vsel %vm1164, %v1163, %v1162
    %v1167 = vadd.f32 %v1028, %v1165
    %v1168 = vadd.f32 %v1032, %v1166
    %v1169 = vrot.slane %v956, 1
    %v1170 = vlaneseq
    %v1171 = vshrl.u32 %v1170, 7
    %v1172 = vsub.s32 0, %v1171
    %v1173 = vrot.slane %v1169, %v1172
    %v1175 = vadd.f32 %v1167, %v1173
    %v1176 = vadd.f32 %v1168, %v1173
    %v1177 = vmax.f32 %v1175, 0.0
    %v1178 = vmax.f32 %v1176, 0.0
    %v1179 = vsub.s32 %v1120, 1
    %v1180 = vsub.s32 %v1121, 1
    %vm1181 = vcmp.lt.s32.totalorder %v332, %v1179
    %vm1182 = vcmp.lt.s32.totalorder %v332, %v1180
    %v1183 = vsel %vm1181, 1, 0
    %v1184 = vsel %vm1182, 1, 0
    %v1185 = vcvt.s32.f32 %v1183
    %v1186 = vcvt.s32.f32 %v1184
    %1188 = vset.pattern.permute.xlu0 0
    %1189 = vperm.xlu0 %1188, %v1185
    %v1190 = vpop.permute.xlu0 %1189
    %1193 = vset.pattern.permute.xlu0 0
    %1194 = vperm.xlu0 %1193, %v1186
    %v1195 = vpop.permute.xlu0 %1194
    %v1197 = vmul.f32 %v1177, %v1190
    %v1198 = vmul.f32 %v1178, %v1195
    %v1199 = vrot.slane %v1197, 4
    %v1200 = vmax.f32 %v1197, %v1199
    %v1201 = vrot.slane %v1200, 2
    %v1202 = vmax.f32 %v1200, %v1201
    %v1203 = vrot.slane %v1202, 1
    %v1204 = vmax.f32 %v1202, %v1203
    %v1205 = vrot.slane %v1198, 4
    %v1206 = vmax.f32 %v1198, %v1205
    %v1207 = vrot.slane %v1206, 2
    %v1208 = vmax.f32 %v1206, %v1207
    %v1209 = vrot.slane %v1208, 1
    %v1210 = vmax.f32 %v1208, %v1209
    %v1211 = vrot.slane %v1112, 1
    %v1212 = vrot.slane %v1116, 1
    %v1213 = vsel %vm1164, %v1211, %v1212
    %v1214 = vsel %vm1164, %v1212, %v1211
    %v1215 = vadd.f32 %v1071, %v1213
    %v1216 = vadd.f32 %v1075, %v1214
    %v1217 = vrot.slane %v1114, 2
    %v1218 = vrot.slane %v1118, 2
    %vm1219 = vcmp.lt.s32.totalorder %v332, 6
    %v1220 = vsel %vm1219, %v1217, %v1218
    %v1221 = vsel %vm1219, %v1218, %v1217
    %v1222 = vadd.f32 %v1215, %v1220
    %v1223 = vadd.f32 %v1216, %v1221
    %v1224 = vrot.slane %v956, 2
    %v1225 = vlaneseq
    %v1226 = vshrl.u32 %v1225, 7
    %v1227 = vsub.s32 0, %v1226
    %v1228 = vrot.slane %v1224, %v1227
    %v1230 = vadd.f32 %v1222, %v1228
    %v1231 = vadd.f32 %v1223, %v1228
    %v1232 = vmax.f32 %v1230, 0.0
    %v1233 = vmax.f32 %v1231, 0.0
    %v1234 = vsub.s32 %v1120, 2
    %v1235 = vsub.s32 %v1121, 2
    %vm1236 = vcmp.lt.s32.totalorder %v332, %v1234
    %vm1237 = vcmp.lt.s32.totalorder %v332, %v1235
    %v1238 = vsel %vm1236, 1, 0
    %v1239 = vsel %vm1237, 1, 0
    %v1240 = vcvt.s32.f32 %v1238
    %v1241 = vcvt.s32.f32 %v1239
    %1243 = vset.pattern.permute.xlu0 0
    %1244 = vperm.xlu0 %1243, %v1240
    %v1245 = vpop.permute.xlu0 %1244
    %1248 = vset.pattern.permute.xlu0 0
    %1249 = vperm.xlu0 %1248, %v1241
    %v1250 = vpop.permute.xlu0 %1249
    %v1252 = vmul.f32 %v1232, %v1245
    %v1253 = vmul.f32 %v1233, %v1250
    %v1254 = vrot.slane %v1252, 4
    %v1255 = vmax.f32 %v1252, %v1254
    %v1256 = vrot.slane %v1255, 2
    %v1257 = vmax.f32 %v1255, %v1256
    %v1258 = vrot.slane %v1257, 1
    %v1259 = vmax.f32 %v1257, %v1258
    %v1260 = vrot.slane %v1253, 4
    %v1261 = vmax.f32 %v1253, %v1260
    %v1262 = vrot.slane %v1261, 2
    %v1263 = vmax.f32 %v1261, %v1262
    %v1264 = vrot.slane %v1263, 1
    %v1265 = vmax.f32 %v1263, %v1264
    %v1266 = vpack.c.bf16 %v949, %v948
    %v1268 = vsel %vm79, %v1266, 0
    %1270 = vmatprep.subr.bf16.mxu0 %v977
    %1271 = vmatpush1.bf16.msra.mxu0 %v976
    %1272 = vmatprep.subr.bf16.mxu0 0
    %1273 = vmatpush1.bf16.msra.mxu0 0
    %1274 = vmatprep.subr.bf16.mxu0 0
    %1275 = vmatpush1.bf16.msra.mxu0 0
    %1276 = vmatprep.subr.bf16.mxu0 0
    %1277 = vmatpush1.bf16.msra.mxu0 0
    %1278 = vmatprep.subr.bf16.mxu0 0
    %1279 = vmatpush1.bf16.msra.mxu0 0
    %1280 = vmatprep.subr.bf16.mxu0 0
    %1281 = vmatpush1.bf16.msra.mxu0 0
    %1282 = vmatprep.subr.bf16.mxu0 0
    %1283 = vmatpush1.bf16.msra.mxu0 0
    %1284 = vmatprep.subr.bf16.mxu0 0
    %1285 = vmatpush1.bf16.msra.mxu0 0
    %1286 = vmatprep.subr.bf16.mxu0 0
    %1287 = vmatpush1.bf16.msra.mxu0 0
    %1288 = vmatprep.subr.bf16.mxu0 0
    %1289 = vmatpush1.bf16.msra.mxu0 0
    %1290 = vmatprep.subr.bf16.mxu0 0
    %1291 = vmatpush1.bf16.msra.mxu0 0
    %1292 = vmatprep.subr.bf16.mxu0 0
    %1293 = vmatpush1.bf16.msra.mxu0 0
    %1294 = vmatprep.subr.bf16.mxu0 0
    %1295 = vmatpush1.bf16.msra.mxu0 0
    %1296 = vmatprep.subr.bf16.mxu0 0
    %1297 = vmatpush1.bf16.msra.mxu0 0
    %1298 = vmatprep.subr.bf16.mxu0 0
    %1299 = vmatpush1.bf16.msra.mxu0 0
    %1300 = vmatprep.subr.bf16.mxu0 0
    %1301 = vmatpush1.bf16.msra.mxu0 0
    %1302 = vmatprep.mubr.bf16.mxu0 0
    %1303 = vmatmul.mubr.bf16.gmra.mrb[0].mxu0 %v1268
    %v1304 = vpop.f32.mrb[0].mxu0
    %v1305 = vadd.f32 0.0, %v1304
    %v1306 = vpop.f32.mrb[0].mxu0
    %v1307 = vadd.f32 0.0, %v1306
    %v1308 = vpop.f32.mrb[0].mxu0
    %v1309 = vadd.f32 0.0, %v1308
    %v1310 = vpop.f32.mrb[0].mxu0
    %v1311 = vadd.f32 0.0, %v1310
    %1312 = vdwg.mxu0
    %1313 = vmatprep.subr.bf16.mxu0 %v979
    %1314 = vmatpush1.bf16.msra.mxu0 %v978
    %1315 = vmatprep.subr.bf16.mxu0 0
    %1316 = vmatpush1.bf16.msra.mxu0 0
    %1317 = vmatprep.subr.bf16.mxu0 0
    %1318 = vmatpush1.bf16.msra.mxu0 0
    %1319 = vmatprep.subr.bf16.mxu0 0
    %1320 = vmatpush1.bf16.msra.mxu0 0
    %1321 = vmatprep.subr.bf16.mxu0 0
    %1322 = vmatpush1.bf16.msra.mxu0 0
    %1323 = vmatprep.subr.bf16.mxu0 0
    %1324 = vmatpush1.bf16.msra.mxu0 0
    %1325 = vmatprep.subr.bf16.mxu0 0
    %1326 = vmatpush1.bf16.msra.mxu0 0
    %1327 = vmatprep.subr.bf16.mxu0 0
    %1328 = vmatpush1.bf16.msra.mxu0 0
    %1329 = vmatprep.subr.bf16.mxu0 0
    %1330 = vmatpush1.bf16.msra.mxu0 0
    %1331 = vmatprep.subr.bf16.mxu0 0
    %1332 = vmatpush1.bf16.msra.mxu0 0
    %1333 = vmatprep.subr.bf16.mxu0 0
    %1334 = vmatpush1.bf16.msra.mxu0 0
    %1335 = vmatprep.subr.bf16.mxu0 0
    %1336 = vmatpush1.bf16.msra.mxu0 0
    %1337 = vmatprep.subr.bf16.mxu0 0
    %1338 = vmatpush1.bf16.msra.mxu0 0
    %1339 = vmatprep.subr.bf16.mxu0 0
    %1340 = vmatpush1.bf16.msra.mxu0 0
    %1341 = vmatprep.subr.bf16.mxu0 0
    %1342 = vmatpush1.bf16.msra.mxu0 0
    %1343 = vmatprep.subr.bf16.mxu0 0
    %1344 = vmatpush1.bf16.msra.mxu0 0
    %1345 = vmatprep.mubr.bf16.mxu0 0
    %1346 = vmatmul.mubr.bf16.gmra.mrb[0].mxu0 %v1268
    %v1347 = vpop.f32.mrb[0].mxu0
    %v1348 = vadd.f32 0.0, %v1347
    %v1349 = vpop.f32.mrb[0].mxu0
    %v1350 = vadd.f32 0.0, %v1349
    %v1351 = vpop.f32.mrb[0].mxu0
    %v1352 = vadd.f32 0.0, %v1351
    %v1353 = vpop.f32.mrb[0].mxu0
    %v1354 = vadd.f32 0.0, %v1353
    %1355 = vdwg.mxu0
    %1356 = vmatprep.subr.bf16.mxu0 %v981
    %1357 = vmatpush1.bf16.msra.mxu0 %v980
    %1358 = vmatprep.subr.bf16.mxu0 0
    %1359 = vmatpush1.bf16.msra.mxu0 0
    %1360 = vmatprep.subr.bf16.mxu0 0
    %1361 = vmatpush1.bf16.msra.mxu0 0
    %1362 = vmatprep.subr.bf16.mxu0 0
    %1363 = vmatpush1.bf16.msra.mxu0 0
    %1364 = vmatprep.subr.bf16.mxu0 0
    %1365 = vmatpush1.bf16.msra.mxu0 0
    %1366 = vmatprep.subr.bf16.mxu0 0
    %1367 = vmatpush1.bf16.msra.mxu0 0
    %1368 = vmatprep.subr.bf16.mxu0 0
    %1369 = vmatpush1.bf16.msra.mxu0 0
    %1370 = vmatprep.subr.bf16.mxu0 0
    %1371 = vmatpush1.bf16.msra.mxu0 0
    %1372 = vmatprep.subr.bf16.mxu0 0
    %1373 = vmatpush1.bf16.msra.mxu0 0
    %1374 = vmatprep.subr.bf16.mxu0 0
    %1375 = vmatpush1.bf16.msra.mxu0 0
    %1376 = vmatprep.subr.bf16.mxu0 0
    %1377 = vmatpush1.bf16.msra.mxu0 0
    %1378 = vmatprep.subr.bf16.mxu0 0
    %1379 = vmatpush1.bf16.msra.mxu0 0
    %1380 = vmatprep.subr.bf16.mxu0 0
    %1381 = vmatpush1.bf16.msra.mxu0 0
    %1382 = vmatprep.subr.bf16.mxu0 0
    %1383 = vmatpush1.bf16.msra.mxu0 0
    %1384 = vmatprep.subr.bf16.mxu0 0
    %1385 = vmatpush1.bf16.msra.mxu0 0
    %1386 = vmatprep.subr.bf16.mxu0 0
    %1387 = vmatpush1.bf16.msra.mxu0 0
    %1388 = vmatprep.mubr.bf16.mxu0 0
    %1389 = vmatmul.mubr.bf16.gmra.mrb[0].mxu0 %v1268
    %v1390 = vpop.f32.mrb[0].mxu0
    %v1391 = vadd.f32 0.0, %v1390
    %v1392 = vpop.f32.mrb[0].mxu0
    %v1393 = vadd.f32 0.0, %v1392
    %v1394 = vpop.f32.mrb[0].mxu0
    %v1395 = vadd.f32 0.0, %v1394
    %v1396 = vpop.f32.mrb[0].mxu0
    %v1397 = vadd.f32 0.0, %v1396
    %1398 = vdwg.mxu0
    %v1399 = vcvt.f32.s32.to.zero.pseudo %v67
    %v1400 = vcvt.f32.s32.to.zero.pseudo %v74
    %v1401 = vadd.f32 %v1305, %v1126
    %v1402 = vadd.f32 %v1309, %v1126
    %v1403 = vmax.f32 %v1401, 0.0
    %v1404 = vmax.f32 %v1402, 0.0
    %vm1405 = vcmp.lt.s32.totalorder %v332, %v1399
    %vm1406 = vcmp.lt.s32.totalorder %v332, %v1400
    %v1407 = vsel %vm1405, 1, 0
    %v1408 = vsel %vm1406, 1, 0
    %v1409 = vcvt.s32.f32 %v1407
    %v1410 = vcvt.s32.f32 %v1408
    %1412 = vset.pattern.permute.xlu0 0
    %1413 = vperm.xlu0 %1412, %v1409
    %v1414 = vpop.permute.xlu0 %1413
    %1417 = vset.pattern.permute.xlu0 0
    %1418 = vperm.xlu0 %1417, %v1410
    %v1419 = vpop.permute.xlu0 %1418
    %v1421 = vmul.f32 %v1403, %v1414
    %v1422 = vmul.f32 %v1404, %v1419
    %v1423 = vrot.slane %v1421, 4
    %v1424 = vmax.f32 %v1421, %v1423
    %v1425 = vrot.slane %v1424, 2
    %v1426 = vmax.f32 %v1424, %v1425
    %v1427 = vrot.slane %v1426, 1
    %v1428 = vmax.f32 %v1426, %v1427
    %v1429 = vrot.slane %v1422, 4
    %v1430 = vmax.f32 %v1422, %v1429
    %v1431 = vrot.slane %v1430, 2
    %v1432 = vmax.f32 %v1430, %v1431
    %v1433 = vrot.slane %v1432, 1
    %v1434 = vmax.f32 %v1432, %v1433
    %v1435 = vrot.slane %v1348, 1
    %v1436 = vrot.slane %v1352, 1
    %v1437 = vsel %vm1164, %v1435, %v1436
    %v1438 = vsel %vm1164, %v1436, %v1435
    %v1439 = vadd.f32 %v1307, %v1437
    %v1440 = vadd.f32 %v1311, %v1438
    %v1441 = vadd.f32 %v1439, %v1173
    %v1442 = vadd.f32 %v1440, %v1173
    %v1443 = vmax.f32 %v1441, 0.0
    %v1444 = vmax.f32 %v1442, 0.0
    %v1445 = vsub.s32 %v1399, 1
    %v1446 = vsub.s32 %v1400, 1
    %vm1447 = vcmp.lt.s32.totalorder %v332, %v1445
    %vm1448 = vcmp.lt.s32.totalorder %v332, %v1446
    %v1449 = vsel %vm1447, 1, 0
    %v1450 = vsel %vm1448, 1, 0
    %v1451 = vcvt.s32.f32 %v1449
    %v1452 = vcvt.s32.f32 %v1450
    %1454 = vset.pattern.permute.xlu0 0
    %1455 = vperm.xlu0 %1454, %v1451
    %v1456 = vpop.permute.xlu0 %1455
    %1459 = vset.pattern.permute.xlu0 0
    %1460 = vperm.xlu0 %1459, %v1452
    %v1461 = vpop.permute.xlu0 %1460
    %v1463 = vmul.f32 %v1443, %v1456
    %v1464 = vmul.f32 %v1444, %v1461
    %v1465 = vrot.slane %v1463, 4
    %v1466 = vmax.f32 %v1463, %v1465
    %v1467 = vrot.slane %v1466, 2
    %v1468 = vmax.f32 %v1466, %v1467
    %v1469 = vrot.slane %v1468, 1
    %v1470 = vmax.f32 %v1468, %v1469
    %v1471 = vrot.slane %v1464, 4
    %v1472 = vmax.f32 %v1464, %v1471
    %v1473 = vrot.slane %v1472, 2
    %v1474 = vmax.f32 %v1472, %v1473
    %v1475 = vrot.slane %v1474, 1
    %v1476 = vmax.f32 %v1474, %v1475
    %v1477 = vrot.slane %v1391, 1
    %v1478 = vrot.slane %v1395, 1
    %v1479 = vsel %vm1164, %v1477, %v1478
    %v1480 = vsel %vm1164, %v1478, %v1477
    %v1481 = vadd.f32 %v1350, %v1479
    %v1482 = vadd.f32 %v1354, %v1480
    %v1483 = vrot.slane %v1393, 2
    %v1484 = vrot.slane %v1397, 2
    %v1485 = vsel %vm1219, %v1483, %v1484
    %v1486 = vsel %vm1219, %v1484, %v1483
    %v1487 = vadd.f32 %v1481, %v1485
    %v1488 = vadd.f32 %v1482, %v1486
    %v1489 = vadd.f32 %v1487, %v1228
    %v1490 = vadd.f32 %v1488, %v1228
    %v1491 = vmax.f32 %v1489, 0.0
    %v1492 = vmax.f32 %v1490, 0.0
    %v1493 = vsub.s32 %v1399, 2
    %v1494 = vsub.s32 %v1400, 2
    %vm1495 = vcmp.lt.s32.totalorder %v332, %v1493
    %vm1496 = vcmp.lt.s32.totalorder %v332, %v1494
    %v1497 = vsel %vm1495, 1, 0
    %v1498 = vsel %vm1496, 1, 0
    %v1499 = vcvt.s32.f32 %v1497
    %v1500 = vcvt.s32.f32 %v1498
    %1502 = vset.pattern.permute.xlu0 0
    %1503 = vperm.xlu0 %1502, %v1499
    %v1504 = vpop.permute.xlu0 %1503
    %1507 = vset.pattern.permute.xlu0 0
    %1508 = vperm.xlu0 %1507, %v1500
    %v1509 = vpop.permute.xlu0 %1508
    %v1511 = vmul.f32 %v1491, %v1504
    %v1512 = vmul.f32 %v1492, %v1509
    %v1513 = vrot.slane %v1511, 4
    %v1514 = vmax.f32 %v1511, %v1513
    %v1515 = vrot.slane %v1514, 2
    %v1516 = vmax.f32 %v1514, %v1515
    %v1517 = vrot.slane %v1516, 1
    %v1518 = vmax.f32 %v1516, %v1517
    %v1519 = vrot.slane %v1512, 4
    %v1520 = vmax.f32 %v1512, %v1519
    %v1521 = vrot.slane %v1520, 2
    %v1522 = vmax.f32 %v1520, %v1521
    %v1523 = vrot.slane %v1522, 1
    %v1524 = vmax.f32 %v1522, %v1523
    %vm1527 = vcmask 1041409
    %v1528 = vsel %vm1527, %v1161, %v1155
    %v1532 = vsel %vm1527, %v1210, %v1204
    %v1536 = vsel %vm1527, %v1265, %v1259
    %v1540 = vsel %vm1527, %v1434, %v1428
    %v1544 = vsel %vm1527, %v1476, %v1470
    %v1548 = vsel %vm1527, %v1524, %v1518
    %s1550 = sld [smem:[#allocation3]]
    %p1551 = scmp.ne.s32.totalorder %s1550, 0
    %s1552 = scalar_select %p1551, 1, 0
    %v1553 = vstv %s1552
    %vm1554 = vcmp.eq.s32.totalorder %v1553, 1
    %v1555 = vsel %vm1554, 0.0, %v1528
    %v1556 = vsel %vm1554, 0.0, %v1532
    %v1557 = vsel %vm1554, 0.0, %v1536
    %v1558 = vsel %vm1554, 0.0, %v1540
    %v1559 = vsel %vm1554, 0.0, %v1544
    %v1560 = vsel %vm1554, 0.0, %v1548
    %v1561 = vld [vmem:[%s8] sm:$0xff]
    %v1562 = vld [vmem:[%s8 + $0x8] sm:$0xff]
    %v1563 = vld [vmem:[%s8 + $0x10] sm:$0xff]
    %v1564 = vld [vmem:[%s8 + $0x18] sm:$0xff]
    %v1565 = vld [vmem:[%s8 + $0x20] sm:$0xff]
    %v1566 = vld [vmem:[%s8 + $0x28] sm:$0xff]
    %v1567 = vld [vmem:[%s8 + $0x30] sm:$0xff]
    %v1568 = vld [vmem:[%s8 + $0x38] sm:$0xff]
    %v1569 = vld [vmem:[%s8 + $0x40] sm:$0xff]
    %v1570 = vld [vmem:[%s8 + $0x48] sm:$0xff]
    %v1571 = vld [vmem:[%s8 + $0x50] sm:$0xff]
    %v1572 = vld [vmem:[%s8 + $0x58] sm:$0xff]
    %v1573 = vld [vmem:[%s8 + $0x60] sm:$0xff]
    %v1574 = vld [vmem:[%s8 + $0x68] sm:$0xff]
    %v1575 = vld [vmem:[%s8 + $0x70] sm:$0xff]
    %v1576 = vld [vmem:[%s8 + $0x78] sm:$0xff]
    %v1577 = vld [vmem:[%s8 + $0x80] sm:$0xff]
    %v1578 = vld [vmem:[%s8 + $0x88] sm:$0xff]
    %v1579 = vld [vmem:[%s8 + $0x90] sm:$0xff]
    %v1580 = vld [vmem:[%s8 + $0x98] sm:$0xff]
    %v1581 = vld [vmem:[%s8 + $0xa0] sm:$0xff]
    %v1582 = vld [vmem:[%s8 + $0xa8] sm:$0xff]
    %v1583 = vld [vmem:[%s8 + $0xb0] sm:$0xff]
    %v1584 = vld [vmem:[%s8 + $0xb8] sm:$0xff]
    %v1585 = vld [vmem:[%s8 + $0xc0] sm:$0xff]
    %v1586 = vld [vmem:[%s8 + $0xc8] sm:$0xff]
    %v1587 = vld [vmem:[%s8 + $0xd0] sm:$0xff]
    %v1588 = vld [vmem:[%s8 + $0xd8] sm:$0xff]
    %v1589 = vld [vmem:[%s8 + $0xe0] sm:$0xff]
    %v1590 = vld [vmem:[%s8 + $0xe8] sm:$0xff]
    %v1591 = vld [vmem:[%s8 + $0xf0] sm:$0xff]
    %v1592 = vld [vmem:[%s8 + $0xf8] sm:$0xff]
    %v1593 = vld [vmem:[%s8 + $0x100] sm:$0xff]
    %v1594 = vld [vmem:[%s8 + $0x108] sm:$0xff]
    %v1595 = vld [vmem:[%s8 + $0x110] sm:$0xff]
    %v1596 = vld [vmem:[%s8 + $0x118] sm:$0xff]
    %v1597 = vld [vmem:[%s8 + $0x120] sm:$0xff]
    %v1598 = vld [vmem:[%s8 + $0x128] sm:$0xff]
    %v1599 = vld [vmem:[%s8 + $0x130] sm:$0xff]
    %v1600 = vld [vmem:[%s8 + $0x138] sm:$0xff]
    %v1601 = vld [vmem:[%s8 + $0x140] sm:$0xff]
    %v1602 = vld [vmem:[%s8 + $0x148] sm:$0xff]
    %v1603 = vld [vmem:[%s8 + $0x150] sm:$0xff]
    %v1604 = vld [vmem:[%s8 + $0x158] sm:$0xff]
    %v1605 = vld [vmem:[%s8 + $0x160] sm:$0xff]
    %v1606 = vld [vmem:[%s8 + $0x168] sm:$0xff]
    %v1607 = vld [vmem:[%s8 + $0x170] sm:$0xff]
    %v1608 = vld [vmem:[%s8 + $0x178] sm:$0xff]
    %v1609 = vld [vmem:[%s8 + $0x180] sm:$0xff]
    %v1610 = vld [vmem:[%s8 + $0x188] sm:$0xff]
    %v1611 = vld [vmem:[%s8 + $0x190] sm:$0xff]
    %v1612 = vld [vmem:[%s8 + $0x198] sm:$0xff]
    %v1613 = vld [vmem:[%s8 + $0x1a0] sm:$0xff]
    %v1614 = vld [vmem:[%s8 + $0x1a8] sm:$0xff]
    %v1615 = vld [vmem:[%s8 + $0x1b0] sm:$0xff]
    %v1616 = vld [vmem:[%s8 + $0x1b8] sm:$0xff]
    %v1617 = vld [vmem:[%s8 + $0x1c0] sm:$0xff]
    %v1618 = vld [vmem:[%s8 + $0x1c8] sm:$0xff]
    %v1619 = vld [vmem:[%s8 + $0x1d0] sm:$0xff]
    %v1620 = vld [vmem:[%s8 + $0x1d8] sm:$0xff]
    %v1621 = vld [vmem:[%s8 + $0x1e0] sm:$0xff]
    %v1622 = vld [vmem:[%s8 + $0x1e8] sm:$0xff]
    %v1623 = vld [vmem:[%s8 + $0x1f0] sm:$0xff]
    %v1624 = vld [vmem:[%s8 + $0x1f8] sm:$0xff]
    %v1625 = vld [vmem:[%s8 + $0x200] sm:$0xff]
    %v1626 = vld [vmem:[%s8 + $0x208] sm:$0xff]
    %v1627 = vld [vmem:[%s8 + $0x210] sm:$0xff]
    %v1628 = vld [vmem:[%s8 + $0x218] sm:$0xff]
    %v1629 = vld [vmem:[%s8 + $0x220] sm:$0xff]
    %v1630 = vld [vmem:[%s8 + $0x228] sm:$0xff]
    %v1631 = vld [vmem:[%s8 + $0x230] sm:$0xff]
    %v1632 = vld [vmem:[%s8 + $0x238] sm:$0xff]
    %v1633 = vld [vmem:[%s8 + $0x240] sm:$0xff]
    %v1634 = vld [vmem:[%s8 + $0x248] sm:$0xff]
    %v1635 = vld [vmem:[%s8 + $0x250] sm:$0xff]
    %v1636 = vld [vmem:[%s8 + $0x258] sm:$0xff]
    %v1637 = vld [vmem:[%s8 + $0x260] sm:$0xff]
    %v1638 = vld [vmem:[%s8 + $0x268] sm:$0xff]
    %v1639 = vld [vmem:[%s8 + $0x270] sm:$0xff]
    %v1640 = vld [vmem:[%s8 + $0x278] sm:$0xff]
    %v1641 = vld [vmem:[%s8 + $0x280] sm:$0xff]
    %v1642 = vld [vmem:[%s8 + $0x288] sm:$0xff]
    %v1643 = vld [vmem:[%s8 + $0x290] sm:$0xff]
    %v1644 = vld [vmem:[%s8 + $0x298] sm:$0xff]
    %v1645 = vld [vmem:[%s8 + $0x2a0] sm:$0xff]
    %v1646 = vld [vmem:[%s8 + $0x2a8] sm:$0xff]
    %v1647 = vld [vmem:[%s8 + $0x2b0] sm:$0xff]
    %v1648 = vld [vmem:[%s8 + $0x2b8] sm:$0xff]
    %v1649 = vld [vmem:[%s8 + $0x2c0] sm:$0xff]
    %v1650 = vld [vmem:[%s8 + $0x2c8] sm:$0xff]
    %v1651 = vld [vmem:[%s8 + $0x2d0] sm:$0xff]
    %v1652 = vld [vmem:[%s8 + $0x2d8] sm:$0xff]
    %v1653 = vld [vmem:[%s8 + $0x2e0] sm:$0xff]
    %v1654 = vld [vmem:[%s8 + $0x2e8] sm:$0xff]
    %v1655 = vld [vmem:[%s8 + $0x2f0] sm:$0xff]
    %v1656 = vld [vmem:[%s8 + $0x2f8] sm:$0xff]
    %v1657 = vld [vmem:[%s9] sm:$0x1]
    %v1659 = vlaneseq
    %v1660 = vshrl.u32 %v1659, 7
    %v1661 = vsub.s32 0, %v1660
    %v1662 = vrot.slane %v1657, %v1661
    %1664 = vmatprep.subr.mxu0 0.0
    %1665 = vmatpush1.msra.mxu0 %v1561
    %1666 = vmatprep.subr.mxu0 0.0
    %1667 = vmatpush1.msra.mxu0 %v1562
    %1668 = vmatprep.subr.mxu0 0.0
    %1669 = vmatpush1.msra.mxu0 %v1563
    %1670 = vmatprep.subr.mxu0 0.0
    %1671 = vmatpush1.msra.mxu0 %v1564
    %1672 = vmatprep.subr.mxu0 0.0
    %1673 = vmatpush1.msra.mxu0 %v1565
    %1674 = vmatprep.subr.mxu0 0.0
    %1675 = vmatpush1.msra.mxu0 %v1566
    %1676 = vmatprep.subr.mxu0 0.0
    %1677 = vmatpush1.msra.mxu0 %v1567
    %1678 = vmatprep.subr.mxu0 0.0
    %1679 = vmatpush1.msra.mxu0 %v1568
    %1680 = vmatprep.subr.mxu0 0.0
    %1681 = vmatpush1.msra.mxu0 %v1569
    %1682 = vmatprep.subr.mxu0 0.0
    %1683 = vmatpush1.msra.mxu0 %v1570
    %1684 = vmatprep.subr.mxu0 0.0
    %1685 = vmatpush1.msra.mxu0 %v1571
    %1686 = vmatprep.subr.mxu0 0.0
    %1687 = vmatpush1.msra.mxu0 %v1572
    %1688 = vmatprep.subr.mxu0 0.0
    %1689 = vmatpush1.msra.mxu0 %v1573
    %1690 = vmatprep.subr.mxu0 0.0
    %1691 = vmatpush1.msra.mxu0 %v1574
    %1692 = vmatprep.subr.mxu0 0.0
    %1693 = vmatpush1.msra.mxu0 %v1575
    %1694 = vmatprep.subr.mxu0 0.0
    %1695 = vmatpush1.msra.mxu0 %v1576
    %1696 = vmatprep.subr.mxu0 0.0
    %1697 = vmatpush1.msra.mxu0 %v1577
    %1698 = vmatprep.subr.mxu0 0.0
    %1699 = vmatpush1.msra.mxu0 %v1578
    %1700 = vmatprep.subr.mxu0 0.0
    %1701 = vmatpush1.msra.mxu0 %v1579
    %1702 = vmatprep.subr.mxu0 0.0
    %1703 = vmatpush1.msra.mxu0 %v1580
    %1704 = vmatprep.subr.mxu0 0.0
    %1705 = vmatpush1.msra.mxu0 %v1581
    %1706 = vmatprep.subr.mxu0 0.0
    %1707 = vmatpush1.msra.mxu0 %v1582
    %1708 = vmatprep.subr.mxu0 0.0
    %1709 = vmatpush1.msra.mxu0 %v1583
    %1710 = vmatprep.subr.mxu0 0.0
    %1711 = vmatpush1.msra.mxu0 %v1584
    %1712 = vmatprep.subr.mxu0 0.0
    %1713 = vmatpush1.msra.mxu0 %v1585
    %1714 = vmatprep.subr.mxu0 0.0
    %1715 = vmatpush1.msra.mxu0 %v1586
    %1716 = vmatprep.subr.mxu0 0.0
    %1717 = vmatpush1.msra.mxu0 %v1587
    %1718 = vmatprep.subr.mxu0 0.0
    %1719 = vmatpush1.msra.mxu0 %v1588
    %1720 = vmatprep.subr.mxu0 0.0
    %1721 = vmatpush1.msra.mxu0 %v1589
    %1722 = vmatprep.subr.mxu0 0.0
    %1723 = vmatpush1.msra.mxu0 %v1590
    %1724 = vmatprep.subr.mxu0 0.0
    %1725 = vmatpush1.msra.mxu0 %v1591
    %1726 = vmatprep.subr.mxu0 0.0
    %1727 = vmatpush1.msra.mxu0 %v1592
    %1728 = vmatprep.mubr.f32.mxu0 %v1556
    %1729 = vmatmul.mubr.f32.gmra.mrb[0].mxu0 %v1555
    %v1730 = vpop.f32.mrb[0].mxu0
    %v1731 = vadd.f32 %v1662, %v1730
    %v1732 = vpop.f32.mrb[0].mxu0
    %1733 = vdwg.mxu0
    %1734 = vmatprep.subr.mxu0 0.0
    %1735 = vmatpush1.msra.mxu0 %v1593
    %1736 = vmatprep.subr.mxu0 0.0
    %1737 = vmatpush1.msra.mxu0 %v1594
    %1738 = vmatprep.subr.mxu0 0.0
    %1739 = vmatpush1.msra.mxu0 %v1595
    %1740 = vmatprep.subr.mxu0 0.0
    %1741 = vmatpush1.msra.mxu0 %v1596
    %1742 = vmatprep.subr.mxu0 0.0
    %1743 = vmatpush1.msra.mxu0 %v1597
    %1744 = vmatprep.subr.mxu0 0.0
    %1745 = vmatpush1.msra.mxu0 %v1598
    %1746 = vmatprep.subr.mxu0 0.0
    %1747 = vmatpush1.msra.mxu0 %v1599
    %1748 = vmatprep.subr.mxu0 0.0
    %1749 = vmatpush1.msra.mxu0 %v1600
    %1750 = vmatprep.subr.mxu0 0.0
    %1751 = vmatpush1.msra.mxu0 %v1601
    %1752 = vmatprep.subr.mxu0 0.0
    %1753 = vmatpush1.msra.mxu0 %v1602
    %1754 = vmatprep.subr.mxu0 0.0
    %1755 = vmatpush1.msra.mxu0 %v1603
    %1756 = vmatprep.subr.mxu0 0.0
    %1757 = vmatpush1.msra.mxu0 %v1604
    %1758 = vmatprep.subr.mxu0 0.0
    %1759 = vmatpush1.msra.mxu0 %v1605
    %1760 = vmatprep.subr.mxu0 0.0
    %1761 = vmatpush1.msra.mxu0 %v1606
    %1762 = vmatprep.subr.mxu0 0.0
    %1763 = vmatpush1.msra.mxu0 %v1607
    %1764 = vmatprep.subr.mxu0 0.0
    %1765 = vmatpush1.msra.mxu0 %v1608
    %1766 = vmatprep.subr.mxu0 0.0
    %1767 = vmatpush1.msra.mxu0 %v1609
    %1768 = vmatprep.subr.mxu0 0.0
    %1769 = vmatpush1.msra.mxu0 %v1610
    %1770 = vmatprep.subr.mxu0 0.0
    %1771 = vmatpush1.msra.mxu0 %v1611
    %1772 = vmatprep.subr.mxu0 0.0
    %1773 = vmatpush1.msra.mxu0 %v1612
    %1774 = vmatprep.subr.mxu0 0.0
    %1775 = vmatpush1.msra.mxu0 %v1613
    %1776 = vmatprep.subr.mxu0 0.0
    %1777 = vmatpush1.msra.mxu0 %v1614
    %1778 = vmatprep.subr.mxu0 0.0
    %1779 = vmatpush1.msra.mxu0 %v1615
    %1780 = vmatprep.subr.mxu0 0.0
    %1781 = vmatpush1.msra.mxu0 %v1616
    %1782 = vmatprep.subr.mxu0 0.0
    %1783 = vmatpush1.msra.mxu0 %v1617
    %1784 = vmatprep.subr.mxu0 0.0
    %1785 = vmatpush1.msra.mxu0 %v1618
    %1786 = vmatprep.subr.mxu0 0.0
    %1787 = vmatpush1.msra.mxu0 %v1619
    %1788 = vmatprep.subr.mxu0 0.0
    %1789 = vmatpush1.msra.mxu0 %v1620
    %1790 = vmatprep.subr.mxu0 0.0
    %1791 = vmatpush1.msra.mxu0 %v1621
    %1792 = vmatprep.subr.mxu0 0.0
    %1793 = vmatpush1.msra.mxu0 %v1622
    %1794 = vmatprep.subr.mxu0 0.0
    %1795 = vmatpush1.msra.mxu0 %v1623
    %1796 = vmatprep.subr.mxu0 0.0
    %1797 = vmatpush1.msra.mxu0 %v1624
    %1798 = vmatprep.mubr.f32.mxu0 %v1558
    %1799 = vmatmul.mubr.f32.gmra.mrb[0].mxu0 %v1557
    %v1800 = vpop.f32.mrb[0].mxu0
    %v1801 = vadd.f32 %v1731, %v1800
    %v1802 = vpop.f32.mrb[0].mxu0
    %1803 = vdwg.mxu0
    %1804 = vmatprep.subr.mxu0 0.0
    %1805 = vmatpush1.msra.mxu0 %v1625
    %1806 = vmatprep.subr.mxu0 0.0
    %1807 = vmatpush1.msra.mxu0 %v1626
    %1808 = vmatprep.subr.mxu0 0.0
    %1809 = vmatpush1.msra.mxu0 %v1627
    %1810 = vmatprep.subr.mxu0 0.0
    %1811 = vmatpush1.msra.mxu0 %v1628
    %1812 = vmatprep.subr.mxu0 0.0
    %1813 = vmatpush1.msra.mxu0 %v1629
    %1814 = vmatprep.subr.mxu0 0.0
    %1815 = vmatpush1.msra.mxu0 %v1630
    %1816 = vmatprep.subr.mxu0 0.0
    %1817 = vmatpush1.msra.mxu0 %v1631
    %1818 = vmatprep.subr.mxu0 0.0
    %1819 = vmatpush1.msra.mxu0 %v1632
    %1820 = vmatprep.subr.mxu0 0.0
    %1821 = vmatpush1.msra.mxu0 %v1633
    %1822 = vmatprep.subr.mxu0 0.0
    %1823 = vmatpush1.msra.mxu0 %v1634
    %1824 = vmatprep.subr.mxu0 0.0
    %1825 = vmatpush1.msra.mxu0 %v1635
    %1826 = vmatprep.subr.mxu0 0.0
    %1827 = vmatpush1.msra.mxu0 %v1636
    %1828 = vmatprep.subr.mxu0 0.0
    %1829 = vmatpush1.msra.mxu0 %v1637
    %1830 = vmatprep.subr.mxu0 0.0
    %1831 = vmatpush1.msra.mxu0 %v1638
    %1832 = vmatprep.subr.mxu0 0.0
    %1833 = vmatpush1.msra.mxu0 %v1639
    %1834 = vmatprep.subr.mxu0 0.0
    %1835 = vmatpush1.msra.mxu0 %v1640
    %1836 = vmatprep.subr.mxu0 0.0
    %1837 = vmatpush1.msra.mxu0 %v1641
    %1838 = vmatprep.subr.mxu0 0.0
    %1839 = vmatpush1.msra.mxu0 %v1642
    %1840 = vmatprep.subr.mxu0 0.0
    %1841 = vmatpush1.msra.mxu0 %v1643
    %1842 = vmatprep.subr.mxu0 0.0
    %1843 = vmatpush1.msra.mxu0 %v1644
    %1844 = vmatprep.subr.mxu0 0.0
    %1845 = vmatpush1.msra.mxu0 %v1645
    %1846 = vmatprep.subr.mxu0 0.0
    %1847 = vmatpush1.msra.mxu0 %v1646
    %1848 = vmatprep.subr.mxu0 0.0
    %1849 = vmatpush1.msra.mxu0 %v1647
    %1850 = vmatprep.subr.mxu0 0.0
    %1851 = vmatpush1.msra.mxu0 %v1648
    %1852 = vmatprep.subr.mxu0 0.0
    %1853 = vmatpush1.msra.mxu0 %v1649
    %1854 = vmatprep.subr.mxu0 0.0
    %1855 = vmatpush1.msra.mxu0 %v1650
    %1856 = vmatprep.subr.mxu0 0.0
    %1857 = vmatpush1.msra.mxu0 %v1651
    %1858 = vmatprep.subr.mxu0 0.0
    %1859 = vmatpush1.msra.mxu0 %v1652
    %1860 = vmatprep.subr.mxu0 0.0
    %1861 = vmatpush1.msra.mxu0 %v1653
    %1862 = vmatprep.subr.mxu0 0.0
    %1863 = vmatpush1.msra.mxu0 %v1654
    %1864 = vmatprep.subr.mxu0 0.0
    %1865 = vmatpush1.msra.mxu0 %v1655
    %1866 = vmatprep.subr.mxu0 0.0
    %1867 = vmatpush1.msra.mxu0 %v1656
    %1868 = vmatprep.mubr.f32.mxu0 %v1560
    %1869 = vmatmul.mubr.f32.gmra.mrb[0].mxu0 %v1559
    %v1870 = vpop.f32.mrb[0].mxu0
    %v1871 = vadd.f32 %v1801, %v1870
    %v1872 = vpop.f32.mrb[0].mxu0
    %1873 = vdwg.mxu0
    %v1874 = vmax.f32 %v1871, 0.0
    %vm1875 = vcmask 484352
    %1876 = vst.msk [vmem:[#allocation4] sm:$0x3] %vm1875, %v1874
    // Predicated region
    $region38: #{seq2seq_difference.1} parent=1 // pred_check
      _
    $region39: #{seq2seq_difference.1} parent=1 // pred_check_branch
      %1878 = sbr.rel (0) target = $region41
    $region40: #{seq2seq_difference.1} parent=1 // pred_region
      %s1880 = ssub.s32 32, 32
      %1881 = vsyncadd [#allocation5], %s1880
      %s1883 = sshll.u32 [#allocation4], 4
      %s1884 = int_to_ptr.vmem [resolvable:$true] %s1883
      %1886 = dma.vmem_to_hbm [thread:$0]  %s1884, 32, %s10, [#allocation5]
    $region41: #{seq2seq_difference.1} parent=1 // pred_fallthru
      _
    // Predicated region
    $region42: #{seq2seq_difference.1} parent=1 // pred_check
      _
    $region43: #{seq2seq_difference.1} parent=1 // pred_check_branch
      %1888 = sbr.rel (0) target = $region45
    $region44: #{seq2seq_difference.1} parent=1 // pred_region
      %1889 = dma.done [#allocation5], 32
    $region45: #{seq2seq_difference.1} parent=1 // pred_fallthru
      _
    %1890 = vsyncpa [#allocation5], 1

</llo_original>
